<compile_context>
chip_gen: v6e
topology: v6e:2x2x1
jax: 0.10.0
libtpu: 0.0.40
codegen_flags: <defaults>
</compile_context>

<pallas_src>
import functools

import jax
import jax.numpy as jnp
from jax.experimental import pallas as pl
from jax.experimental.pallas import tpu as pltpu


def _round_up(x, m):
    return (x + m - 1) // m * m


def _device_kind():
    try:
        return jax.devices()[0].device_kind.lower()
    except Exception:
        return ""


def _tensorcores_per_chip():
    # v7x exposes 2 TensorCores per chip; v5e / v6e expose 1.
    return 2 if "7" in _device_kind() else 1


def _has_bf16_eup():
    # v5e has no bf16 VPU/EUP; v6e / v7x do.
    kind = _device_kind()
    return not ("v5 lite" in kind or "v5lite" in kind or "v5e" in kind)


def _choose_batch_tile(B, n_cores, cap=2048):
    """Fewest, biggest steps; 2-way split only on v7x when >=256 rows/step."""
    min_steps = 2 if (n_cores >= 2 and B >= 512) else 1
    n_steps = max(min_steps, pl.cdiv(B, cap))
    return max(16, _round_up(pl.cdiv(B, n_steps), 16))


def _generator_kernel(x_ref, w1_ref, b1_ref, w2_ref, b2_ref, w3_ref, b3_ref,
                      o_ref, *, tanh_in_bf16):
    # x arrives unpadded in f32 (tiny: tile x noise_dim); cast to bf16 here so
    # the MXU runs at bf16 rate without a separate wrapper-side pad/cast pass.
    x = x_ref[...].astype(jnp.bfloat16)

    # Linear 1 (bf16 x bf16 -> f32 on MXU) + bias + LeakyReLU(0.2) in f32.
    h1 = jnp.dot(x, w1_ref[...], preferred_element_type=jnp.float32)
    h1 = h1 + b1_ref[...]
    h1 = jnp.maximum(h1, 0.2 * h1)          # exact LeakyReLU(0.2), 1 VALU op

    # Linear 2 + LeakyReLU(0.2)
    h2 = jnp.dot(h1.astype(jnp.bfloat16), w2_ref[...],
                 preferred_element_type=jnp.float32)
    h2 = h2 + b2_ref[...]
    h2 = jnp.maximum(h2, 0.2 * h2)

    # Linear 3 + Tanh (tanh goes to the EUP slot).
    h3 = jnp.dot(h2.astype(jnp.bfloat16), w3_ref[...],
                 preferred_element_type=jnp.float32)
    h3 = h3 + b3_ref[...]
    if tanh_in_bf16:
        o_ref[...] = jnp.tanh(h3.astype(jnp.bfloat16)).astype(o_ref.dtype)
    else:
        o_ref[...] = jnp.tanh(h3).astype(o_ref.dtype)


def prepare_generator_params(params):
    """Zero-pad layer OUTPUT dims to multiples of 128, pre-cast weights to bf16.

    The K dim of layer 1 is left at its true size (the MXU pads internally and
    the x BlockSpec uses the full last dim).  Padding is a numerical identity:
    padded weight rows/cols and bias lanes are 0, LeakyReLU(0) = 0, and the
    padded image lanes (tanh(0) = 0) are sliced off only if they exist.
    """
    w1, b1 = params["w1"], params["b1"]
    w2, b2 = params["w2"], params["b2"]
    w3, b3 = params["w3"], params["b3"]
    N, H = w1.shape
    H2 = w2.shape[1]
    IMG = w3.shape[1]
    Hp, H2p, IMGp = (_round_up(d, 128) for d in (H, H2, IMG))

    def pad2(a, rows, cols):
        return jnp.pad(a, ((0, rows - a.shape[0]), (0, cols - a.shape[1])))

    return {
        "w1": pad2(w1, N, Hp).astype(jnp.bfloat16),
        "b1": pad2(b1.reshape(1, -1), 1, Hp).astype(jnp.float32),
        "w2": pad2(w2, Hp, H2p).astype(jnp.bfloat16),
        "b2": pad2(b2.reshape(1, -1), 1, H2p).astype(jnp.float32),
        "w3": pad2(w3, H2p, IMGp).astype(jnp.bfloat16),
        "b3": pad2(b3.reshape(1, -1), 1, IMGp).astype(jnp.float32),
        "dims": (N, H, H2, IMG),
        "padded_dims": (Hp, H2p, IMGp),
    }


def generator_forward(x, prepared, *, batch_tile=None, out_dtype=jnp.float32):
    """x: (B, noise_vector_size) float32. prepared: prepare_generator_params().

    out_dtype=jnp.bfloat16 halves the dominant output writeback (and uses bf16
    tanh on v6e/v7x); default float32 matches the PyTorch module exactly.
    """
    N, H, H2, IMG = prepared["dims"]
    Hp, H2p, IMGp = prepared["padded_dims"]
    B = x.shape[0]
    assert x.shape[1] == N

    n_cores = _tensorcores_per_chip()
    if batch_tile is None:
        batch_tile = _choose_batch_tile(B, n_cores)
    batch_tile = max(16, _round_up(batch_tile, 16))
    Bp = _round_up(B, batch_tile)

    # Only pad the batch dim when needed; no feature pad / dtype-cast pass.
    xp = x if Bp == B else jnp.pad(x, ((0, Bp - B), (0, 0)))

    grid = (Bp // batch_tile,)
    tanh_in_bf16 = (jnp.dtype(out_dtype) == jnp.dtype(jnp.bfloat16)
                    and _has_bf16_eup())
    kernel = functools.partial(_generator_kernel, tanh_in_bf16=tanh_in_bf16)

    out_bytes = Bp * IMGp * jnp.dtype(out_dtype).itemsize
    weight_bytes = 2 * (N * Hp + Hp * H2p + H2p * IMGp) + 4 * (Hp + H2p + IMGp)
    cost = pl.CostEstimate(
        flops=2 * Bp * (N * Hp + Hp * H2p + H2p * IMGp),
        transcendentals=Bp * IMGp,
        bytes_accessed=Bp * N * 4 + weight_bytes + out_bytes,
    )

    def build(single_buffer_weights):
        wkw = ({"pipeline_mode": pl.Buffered(1)} if single_buffer_weights
               else {})
        return pl.pallas_call(
            kernel,
            out_shape=jax.ShapeDtypeStruct((Bp, IMGp), out_dtype),
            grid=grid,
            in_specs=[
                pl.BlockSpec((batch_tile, N), lambda i: (i, 0)),      # x
                pl.BlockSpec((N, Hp), lambda i: (0, 0), **wkw),       # w1
                pl.BlockSpec((1, Hp), lambda i: (0, 0), **wkw),       # b1
                pl.BlockSpec((Hp, H2p), lambda i: (0, 0), **wkw),     # w2
                pl.BlockSpec((1, H2p), lambda i: (0, 0), **wkw),      # b2
                pl.BlockSpec((H2p, IMGp), lambda i: (0, 0), **wkw),   # w3
                pl.BlockSpec((1, IMGp), lambda i: (0, 0), **wkw),     # b3
            ],
            out_specs=pl.BlockSpec((batch_tile, IMGp), lambda i: (i, 0)),
            compiler_params=pltpu.CompilerParams(
                dimension_semantics=("parallel",)),
            cost_estimate=cost,
        )

    args = (xp, prepared["w1"], prepared["b1"], prepared["w2"],
            prepared["b2"], prepared["w3"], prepared["b3"])
    try:
        out = build(True)(*args)
    except Exception:
        # Fallback: default double-buffered weight blocks (tiny VMEM anyway).
        out = build(False)(*args)

    # Slice only when padding actually exists (avoids an extra HBM pass over
    # the output, the largest tensor, in the common no-padding case).
    if Bp != B or IMGp != IMG:
        out = out[:B, :IMG]
    return out


def init_generator_params(key, noise_vector_size, hidden_dim, image_size):
    """Deterministic init mimicking PyTorch nn.Linear default U(-1/sqrt(fan_in), +)."""
    def linear_init(k, fan_in, fan_out):
        kw, kb = jax.random.split(k)
        bound = 1.0 / jnp.sqrt(fan_in)
        w = jax.random.uniform(kw, (fan_in, fan_out), jnp.float32, -bound, bound)
        b = jax.random.uniform(kb, (fan_out,), jnp.float32, -bound, bound)
        return w, b

    k1, k2, k3 = jax.random.split(key, 3)
    w1, b1 = linear_init(k1, noise_vector_size, hidden_dim)
    w2, b2 = linear_init(k2, hidden_dim, hidden_dim * 2)
    w3, b3 = linear_init(k3, hidden_dim * 2, image_size)
    return {"w1": w1, "b1": b1, "w2": w2, "b2": b2, "w3": w3, "b3": b3}


def generator_reference_f32(x, params):
    """Pure-f32 JAX reference."""
    h = x @ params["w1"] + params["b1"]
    h = jnp.where(h >= 0, h, 0.2 * h)
    h = h @ params["w2"] + params["b2"]
    h = jnp.where(h >= 0, h, 0.2 * h)
    h = h @ params["w3"] + params["b3"]
    return jnp.tanh(h)


def generator_reference_bf16(x, params):
    """Reference with the same bf16-operand / f32-accumulate scheme as the kernel."""
    bf = jnp.bfloat16
    h = jnp.dot(x.astype(bf), params["w1"].astype(bf),
                preferred_element_type=jnp.float32) + params["b1"]
    h = jnp.maximum(h, 0.2 * h)
    h = jnp.dot(h.astype(bf), params["w2"].astype(bf),
                preferred_element_type=jnp.float32) + params["b2"]
    h = jnp.maximum(h, 0.2 * h)
    h = jnp.dot(h.astype(bf), params["w3"].astype(bf),
                preferred_element_type=jnp.float32) + params["b3"]
    return jnp.tanh(h)


if __name__ == "__main__":
    noise_vector_size = 32
    hidden_dim = 64          # -> second hidden width 128
    image_size = 256
    batch = 256              # single grid step on v5e/v6e (and v7x, B < 512)

    key = jax.random.PRNGKey(0)
    k_params, k_x = jax.random.split(key)
    params = init_generator_params(k_params, noise_vector_size, hidden_dim,
                                   image_size)
    x = jax.random.normal(k_x, (batch, noise_vector_size), jnp.float32)

    prepared = prepare_generator_params(params)
    out = generator_forward(x, prepared)
    out = jax.block_until_ready(out)

    assert out.shape == (batch, image_size)
    assert out.dtype == jnp.float32

    # Tight check vs a reference using the same bf16/f32 mixed precision.
    ref_bf16 = generator_reference_bf16(x, params)
    assert jnp.allclose(out, ref_bf16, atol=1e-3, rtol=1e-3), \
        "mismatch vs bf16-matched reference"

    # Loose sanity check vs the pure-f32 reference (bf16 operand rounding).
    ref_f32 = generator_reference_f32(x, params)
    assert jnp.allclose(out, ref_f32, atol=5e-2, rtol=5e-2), \
        "mismatch vs f32 reference"

    print("KERNEL_OK")
</pallas_src>

<mosaic_0001>
module attributes {stable_mosaic.version = 11 : i64} {
  func.func @_generator_kernel(%arg0: i32, %arg1: memref<256x32xf32, #tpu.memory_space<vmem>>, %arg2: memref<32x128xbf16, #tpu.memory_space<vmem>>, %arg3: memref<1x128xf32, #tpu.memory_space<vmem>>, %arg4: memref<128x128xbf16, #tpu.memory_space<vmem>>, %arg5: memref<1x128xf32, #tpu.memory_space<vmem>>, %arg6: memref<128x256xbf16, #tpu.memory_space<vmem>>, %arg7: memref<1x256xf32, #tpu.memory_space<vmem>>, %arg8: memref<256x256xf32, #tpu.memory_space<vmem>>) attributes {dimension_semantics = [#tpu.dimension_semantics<parallel>], iteration_bounds = array<i64: 1>, scalar_prefetch = 0 : i64, scratch_operands = 0 : i64, tpu.core_type = #tpu.core_type<tc>, window_params = [{transform_indices = @transform_0, window_bounds = array<i64: 256, 32>}, {pipeline_mode = #tpu.pipeline_mode<synchronous>, transform_indices = @transform_1, window_bounds = array<i64: 32, 128>}, {pipeline_mode = #tpu.pipeline_mode<synchronous>, transform_indices = @transform_2, window_bounds = array<i64: 1, 128>}, {pipeline_mode = #tpu.pipeline_mode<synchronous>, transform_indices = @transform_3, window_bounds = array<i64: 128, 128>}, {pipeline_mode = #tpu.pipeline_mode<synchronous>, transform_indices = @transform_4, window_bounds = array<i64: 1, 128>}, {pipeline_mode = #tpu.pipeline_mode<synchronous>, transform_indices = @transform_5, window_bounds = array<i64: 128, 256>}, {pipeline_mode = #tpu.pipeline_mode<synchronous>, transform_indices = @transform_6, window_bounds = array<i64: 1, 256>}, {transform_indices = @transform_7, window_bounds = array<i64: 256, 256>}]} {
    %c0 = arith.constant 0 : index
    %c0_0 = arith.constant 0 : index
    %0 = vector.load %arg1[%c0, %c0_0] : memref<256x32xf32, #tpu.memory_space<vmem>>, vector<256x32xf32>
    %1 = arith.truncf %0 : vector<256x32xf32> to vector<256x32xbf16>
    %c0_1 = arith.constant 0 : index
    %c0_2 = arith.constant 0 : index
    %2 = vector.load %arg2[%c0_1, %c0_2] : memref<32x128xbf16, #tpu.memory_space<vmem>>, vector<32x128xbf16>
    %cst = arith.constant dense<0.000000e+00> : vector<256x128xf32>
    %3 = tpu.matmul %1, %2, %cst {dimension_numbers = #tpu.dot_dimension_numbers<[1], [0], [0], [1], [0, 0, 1, 1], [], []>} : vector<256x32xbf16>, vector<32x128xbf16>, vector<256x128xf32> -> vector<256x128xf32>
    %c0_3 = arith.constant 0 : index
    %c0_4 = arith.constant 0 : index
    %4 = vector.load %arg3[%c0_3, %c0_4] : memref<1x128xf32, #tpu.memory_space<vmem>>, vector<1x128xf32>
    %5 = vector.broadcast %4 : vector<1x128xf32> to vector<256x128xf32>
    %6 = arith.addf %3, %5 : vector<256x128xf32>
    %cst_5 = arith.constant 2.000000e-01 : f32
    %7 = vector.broadcast %cst_5 : f32 to vector<256x128xf32>
    %8 = arith.mulf %7, %6 : vector<256x128xf32>
    %9 = arith.maximumf %6, %8 : vector<256x128xf32>
    %10 = arith.truncf %9 : vector<256x128xf32> to vector<256x128xbf16>
    %c0_6 = arith.constant 0 : index
    %c0_7 = arith.constant 0 : index
    %11 = vector.load %arg4[%c0_6, %c0_7] : memref<128x128xbf16, #tpu.memory_space<vmem>>, vector<128x128xbf16>
    %cst_8 = arith.constant dense<0.000000e+00> : vector<256x128xf32>
    %12 = tpu.matmul %10, %11, %cst_8 {dimension_numbers = #tpu.dot_dimension_numbers<[1], [0], [0], [1], [0, 0, 1, 1], [], []>} : vector<256x128xbf16>, vector<128x128xbf16>, vector<256x128xf32> -> vector<256x128xf32>
    %c0_9 = arith.constant 0 : index
    %c0_10 = arith.constant 0 : index
    %13 = vector.load %arg5[%c0_9, %c0_10] : memref<1x128xf32, #tpu.memory_space<vmem>>, vector<1x128xf32>
    %14 = vector.broadcast %13 : vector<1x128xf32> to vector<256x128xf32>
    %15 = arith.addf %12, %14 : vector<256x128xf32>
    %cst_11 = arith.constant 2.000000e-01 : f32
    %16 = vector.broadcast %cst_11 : f32 to vector<256x128xf32>
    %17 = arith.mulf %16, %15 : vector<256x128xf32>
    %18 = arith.maximumf %15, %17 : vector<256x128xf32>
    %19 = arith.truncf %18 : vector<256x128xf32> to vector<256x128xbf16>
    %c0_12 = arith.constant 0 : index
    %c0_13 = arith.constant 0 : index
    %20 = vector.load %arg6[%c0_12, %c0_13] : memref<128x256xbf16, #tpu.memory_space<vmem>>, vector<128x256xbf16>
    %cst_14 = arith.constant dense<0.000000e+00> : vector<256x256xf32>
    %21 = tpu.matmul %19, %20, %cst_14 {dimension_numbers = #tpu.dot_dimension_numbers<[1], [0], [0], [1], [0, 0, 1, 1], [], []>} : vector<256x128xbf16>, vector<128x256xbf16>, vector<256x256xf32> -> vector<256x256xf32>
    %c0_15 = arith.constant 0 : index
    %c0_16 = arith.constant 0 : index
    %22 = vector.load %arg7[%c0_15, %c0_16] : memref<1x256xf32, #tpu.memory_space<vmem>>, vector<1x256xf32>
    %23 = vector.broadcast %22 : vector<1x256xf32> to vector<256x256xf32>
    %24 = arith.addf %21, %23 : vector<256x256xf32>
    %25 = math.tanh %24 : vector<256x256xf32>
    %c0_17 = arith.constant 0 : index
    %c0_18 = arith.constant 0 : index
    %26 = vector.load %arg8[%c0_17, %c0_18] : memref<256x256xf32, #tpu.memory_space<vmem>>, vector<256x256xf32>
    tpu.vector_store %arg8[%c0_17, %c0_18], %25 {strides = array<i32>} : memref<256x256xf32, #tpu.memory_space<vmem>>, vector<256x256xf32>,
    return
  }
  func.func @transform_0(%arg0: i32) -> (i32, i32) {
    %c0_i32 = arith.constant 0 : i32
    %c0_i32_0 = arith.constant 0 : i32
    return %arg0, %c0_i32 : i32, i32
  }
  func.func @transform_1(%arg0: i32) -> (i32, i32) {
    %c0_i32 = arith.constant 0 : i32
    %c0_i32_0 = arith.constant 0 : i32
    %c0_i32_1 = arith.constant 0 : i32
    return %c0_i32, %c0_i32_0 : i32, i32
  }
  func.func @transform_2(%arg0: i32) -> (i32, i32) {
    %c0_i32 = arith.constant 0 : i32
    %c0_i32_0 = arith.constant 0 : i32
    %c0_i32_1 = arith.constant 0 : i32
    return %c0_i32, %c0_i32_0 : i32, i32
  }
  func.func @transform_3(%arg0: i32) -> (i32, i32) {
    %c0_i32 = arith.constant 0 : i32
    %c0_i32_0 = arith.constant 0 : i32
    %c0_i32_1 = arith.constant 0 : i32
    return %c0_i32, %c0_i32_0 : i32, i32
  }
  func.func @transform_4(%arg0: i32) -> (i32, i32) {
    %c0_i32 = arith.constant 0 : i32
    %c0_i32_0 = arith.constant 0 : i32
    %c0_i32_1 = arith.constant 0 : i32
    return %c0_i32, %c0_i32_0 : i32, i32
  }
  func.func @transform_5(%arg0: i32) -> (i32, i32) {
    %c0_i32 = arith.constant 0 : i32
    %c0_i32_0 = arith.constant 0 : i32
    %c0_i32_1 = arith.constant 0 : i32
    return %c0_i32, %c0_i32_0 : i32, i32
  }
  func.func @transform_6(%arg0: i32) -> (i32, i32) {
    %c0_i32 = arith.constant 0 : i32
    %c0_i32_0 = arith.constant 0 : i32
    %c0_i32_1 = arith.constant 0 : i32
    return %c0_i32, %c0_i32_0 : i32, i32
  }
  func.func @transform_7(%arg0: i32) -> (i32, i32) {
    %c0_i32 = arith.constant 0 : i32
    %c0_i32_0 = arith.constant 0 : i32
    return %arg0, %c0_i32 : i32, i32
  }
}

module attributes {stable_mosaic.version = 11 : i64} {
  func.func @_generator_kernel(%arg0: i32, %arg1: memref<256x32xf32, #tpu.memory_space<vmem>>, %arg2: memref<32x128xbf16, #tpu.memory_space<vmem>>, %arg3: memref<1x128xf32, #tpu.memory_space<vmem>>, %arg4: memref<128x128xbf16, #tpu.memory_space<vmem>>, %arg5: memref<1x128xf32, #tpu.memory_space<vmem>>, %arg6: memref<128x256xbf16, #tpu.memory_space<vmem>>, %arg7: memref<1x256xf32, #tpu.memory_space<vmem>>, %arg8: memref<256x256xf32, #tpu.memory_space<vmem>>) attributes {dimension_semantics = [#tpu.dimension_semantics<parallel>], iteration_bounds = array<i64: 1>, scalar_prefetch = 0 : i64, scratch_operands = 0 : i64, tpu.core_type = #tpu.core_type<tc>, window_params = [{transform_indices = @transform_0, window_bounds = array<i64: 256, 32>}, {pipeline_mode = #tpu.pipeline_mode<synchronous>, transform_indices = @transform_1, window_bounds = array<i64: 32, 128>}, {pipeline_mode = #tpu.pipeline_mode<synchronous>, transform_indices = @transform_2, window_bounds = array<i64: 1, 128>}, {pipeline_mode = #tpu.pipeline_mode<synchronous>, transform_indices = @transform_3, window_bounds = array<i64: 128, 128>}, {pipeline_mode = #tpu.pipeline_mode<synchronous>, transform_indices = @transform_4, window_bounds = array<i64: 1, 128>}, {pipeline_mode = #tpu.pipeline_mode<synchronous>, transform_indices = @transform_5, window_bounds = array<i64: 128, 256>}, {pipeline_mode = #tpu.pipeline_mode<synchronous>, transform_indices = @transform_6, window_bounds = array<i64: 1, 256>}, {transform_indices = @transform_7, window_bounds = array<i64: 256, 256>}]} {
    %c0 = arith.constant 0 : index
    %c0_0 = arith.constant 0 : index
    %0 = vector.load %arg1[%c0, %c0_0] : memref<256x32xf32, #tpu.memory_space<vmem>>, vector<256x32xf32>
    %1 = arith.truncf %0 : vector<256x32xf32> to vector<256x32xbf16>
    %c0_1 = arith.constant 0 : index
    %c0_2 = arith.constant 0 : index
    %2 = vector.load %arg2[%c0_1, %c0_2] : memref<32x128xbf16, #tpu.memory_space<vmem>>, vector<32x128xbf16>
    %cst = arith.constant dense<0.000000e+00> : vector<256x128xf32>
    %3 = tpu.matmul %1, %2, %cst {dimension_numbers = #tpu.dot_dimension_numbers<[1], [0], [0], [1], [0, 0, 1, 1], [], []>} : vector<256x32xbf16>, vector<32x128xbf16>, vector<256x128xf32> -> vector<256x128xf32>
    %c0_3 = arith.constant 0 : index
    %c0_4 = arith.constant 0 : index
    %4 = vector.load %arg3[%c0_3, %c0_4] : memref<1x128xf32, #tpu.memory_space<vmem>>, vector<1x128xf32>
    %5 = vector.broadcast %4 : vector<1x128xf32> to vector<256x128xf32>
    %6 = arith.addf %3, %5 : vector<256x128xf32>
    %cst_5 = arith.constant 2.000000e-01 : f32
    %7 = vector.broadcast %cst_5 : f32 to vector<256x128xf32>
    %8 = arith.mulf %7, %6 : vector<256x128xf32>
    %9 = arith.maximumf %6, %8 : vector<256x128xf32>
    %10 = arith.truncf %9 : vector<256x128xf32> to vector<256x128xbf16>
    %c0_6 = arith.constant 0 : index
    %c0_7 = arith.constant 0 : index
    %11 = vector.load %arg4[%c0_6, %c0_7] : memref<128x128xbf16, #tpu.memory_space<vmem>>, vector<128x128xbf16>
    %cst_8 = arith.constant dense<0.000000e+00> : vector<256x128xf32>
    %12 = tpu.matmul %10, %11, %cst_8 {dimension_numbers = #tpu.dot_dimension_numbers<[1], [0], [0], [1], [0, 0, 1, 1], [], []>} : vector<256x128xbf16>, vector<128x128xbf16>, vector<256x128xf32> -> vector<256x128xf32>
    %c0_9 = arith.constant 0 : index
    %c0_10 = arith.constant 0 : index
    %13 = vector.load %arg5[%c0_9, %c0_10] : memref<1x128xf32, #tpu.memory_space<vmem>>, vector<1x128xf32>
    %14 = vector.broadcast %13 : vector<1x128xf32> to vector<256x128xf32>
    %15 = arith.addf %12, %14 : vector<256x128xf32>
    %cst_11 = arith.constant 2.000000e-01 : f32
    %16 = vector.broadcast %cst_11 : f32 to vector<256x128xf32>
    %17 = arith.mulf %16, %15 : vector<256x128xf32>
    %18 = arith.maximumf %15, %17 : vector<256x128xf32>
    %19 = arith.truncf %18 : vector<256x128xf32> to vector<256x128xbf16>
    %c0_12 = arith.constant 0 : index
    %c0_13 = arith.constant 0 : index
    %20 = vector.load %arg6[%c0_12, %c0_13] : memref<128x256xbf16, #tpu.memory_space<vmem>>, vector<128x256xbf16>
    %cst_14 = arith.constant dense<0.000000e+00> : vector<256x256xf32>
    %21 = tpu.matmul %19, %20, %cst_14 {dimension_numbers = #tpu.dot_dimension_numbers<[1], [0], [0], [1], [0, 0, 1, 1], [], []>} : vector<256x128xbf16>, vector<128x256xbf16>, vector<256x256xf32> -> vector<256x256xf32>
    %c0_15 = arith.constant 0 : index
    %c0_16 = arith.constant 0 : index
    %22 = vector.load %arg7[%c0_15, %c0_16] : memref<1x256xf32, #tpu.memory_space<vmem>>, vector<1x256xf32>
    %23 = vector.broadcast %22 : vector<1x256xf32> to vector<256x256xf32>
    %24 = arith.addf %21, %23 : vector<256x256xf32>
    %25 = math.tanh %24 : vector<256x256xf32>
    %c0_17 = arith.constant 0 : index
    %c0_18 = arith.constant 0 : index
    %26 = vector.load %arg8[%c0_17, %c0_18] : memref<256x256xf32, #tpu.memory_space<vmem>>, vector<256x256xf32>
    tpu.vector_store %arg8[%c0_17, %c0_18], %25 {strides = array<i32>} : memref<256x256xf32, #tpu.memory_space<vmem>>, vector<256x256xf32>,
    return
  }
  func.func @transform_0(%arg0: i32) -> (i32, i32) {
    %c0_i32 = arith.constant 0 : i32
    %c0_i32_0 = arith.constant 0 : i32
    return %arg0, %c0_i32 : i32, i32
  }
  func.func @transform_1(%arg0: i32) -> (i32, i32) {
    %c0_i32 = arith.constant 0 : i32
    %c0_i32_0 = arith.constant 0 : i32
    %c0_i32_1 = arith.constant 0 : i32
    return %c0_i32, %c0_i32_0 : i32, i32
  }
  func.func @transform_2(%arg0: i32) -> (i32, i32) {
    %c0_i32 = arith.constant 0 : i32
    %c0_i32_0 = arith.constant 0 : i32
    %c0_i32_1 = arith.constant 0 : i32
    return %c0_i32, %c0_i32_0 : i32, i32
  }
  func.func @transform_3(%arg0: i32) -> (i32, i32) {
    %c0_i32 = arith.constant 0 : i32
    %c0_i32_0 = arith.constant 0 : i32
    %c0_i32_1 = arith.constant 0 : i32
    return %c0_i32, %c0_i32_0 : i32, i32
  }
  func.func @transform_4(%arg0: i32) -> (i32, i32) {
    %c0_i32 = arith.constant 0 : i32
    %c0_i32_0 = arith.constant 0 : i32
    %c0_i32_1 = arith.constant 0 : i32
    return %c0_i32, %c0_i32_0 : i32, i32
  }
  func.func @transform_5(%arg0: i32) -> (i32, i32) {
    %c0_i32 = arith.constant 0 : i32
    %c0_i32_0 = arith.constant 0 : i32
    %c0_i32_1 = arith.constant 0 : i32
    return %c0_i32, %c0_i32_0 : i32, i32
  }
  func.func @transform_6(%arg0: i32) -> (i32, i32) {
    %c0_i32 = arith.constant 0 : i32
    %c0_i32_0 = arith.constant 0 : i32
    %c0_i32_1 = arith.constant 0 : i32
    return %c0_i32, %c0_i32_0 : i32, i32
  }
  func.func @transform_7(%arg0: i32) -> (i32, i32) {
    %c0_i32 = arith.constant 0 : i32
    %c0_i32_0 = arith.constant 0 : i32
    return %arg0, %c0_i32 : i32, i32
  }
}

</mosaic_0001>

<llo_original>
// kernel: tpu_custom_call.1
$region0: #{tpu_custom_call.1}
  #allocation0 [shape = 'u32[]', space=smem, size = 0x4, offset = 0x4, fixed_abs, tag = 'smem constant byte address 0x4 - core index']
  #allocation1 [shape = 'u32[144,128]{1,0:T(1,128)}', space=vmem, size = 0x12000, scoped, tag = 'internal scratch']
  %s0 = inlined_call_operand.vmem [shape: f32[256,32], index: 0, kind: input, shape index: {}]
  %s1 = inlined_call_operand.vmem [shape: bf16[32,128], index: 1, kind: input, shape index: {}]
  %s2 = inlined_call_operand.vmem [shape: f32[1,128], index: 2, kind: input, shape index: {}]
  %s3 = inlined_call_operand.vmem [shape: bf16[128,128], index: 3, kind: input, shape index: {}]
  %s4 = inlined_call_operand.vmem [shape: f32[1,128], index: 4, kind: input, shape index: {}]
  %s5 = inlined_call_operand.vmem [shape: bf16[128,256], index: 5, kind: input, shape index: {}]
  %s6 = inlined_call_operand.vmem [shape: f32[1,256], index: 6, kind: input, shape index: {}]
  %s7 = inlined_call_operand.hbm [shape: f32[256,256], index: 7, kind: output, shape index: {}]
  %s8 = sld [smem:[#allocation0]]
  $region38: #{tpu_custom_call.1} parent=0
    _
  %s10 = ssub.s32 1, %s8
  %s11 = scalar_select 0, %s10, %s8
  $region1: #{tpu_custom_call.1} parent=0
    #allocation2 [shape = 'u8[262144]{0}', space=vmem, size = 0x40000, scoped, tag = 'output window, operand 0, single buffered']
    #allocation3 [shape = 's32[1]{0}', space=sflag, size = 0x4, scoped, tag = 'scoped memory for tpu_custom_call.1']
    %12 = vsyncpa [#allocation3], 0
    // Predicated region
    $region2: #{tpu_custom_call.1} parent=1 // pred_check
      _
    $region3: #{tpu_custom_call.1} parent=1 // pred_check_branch
      %14 = sbr.rel (0) target = $region5
    $region4: #{tpu_custom_call.1} parent=1 // pred_region
      _
    $region5: #{tpu_custom_call.1} parent=1 // pred_fallthru
      _
    // Predicated region
    $region6: #{tpu_custom_call.1} parent=1 // pred_check
      _
    $region7: #{tpu_custom_call.1} parent=1 // pred_check_branch
      %16 = sbr.rel (0) target = $region9
    $region8: #{tpu_custom_call.1} parent=1 // pred_region
      _
    $region9: #{tpu_custom_call.1} parent=1 // pred_fallthru
      _
    // Predicated region
    $region10: #{tpu_custom_call.1} parent=1 // pred_check
      _
    $region11: #{tpu_custom_call.1} parent=1 // pred_check_branch
      %18 = sbr.rel (0) target = $region13
    $region12: #{tpu_custom_call.1} parent=1 // pred_region
      _
    $region13: #{tpu_custom_call.1} parent=1 // pred_fallthru
      _
    // Predicated region
    $region14: #{tpu_custom_call.1} parent=1 // pred_check
      _
    $region15: #{tpu_custom_call.1} parent=1 // pred_check_branch
      %20 = sbr.rel (0) target = $region17
    $region16: #{tpu_custom_call.1} parent=1 // pred_region
      _
    $region17: #{tpu_custom_call.1} parent=1 // pred_fallthru
      _
    // Predicated region
    $region18: #{tpu_custom_call.1} parent=1 // pred_check
      _
    $region19: #{tpu_custom_call.1} parent=1 // pred_check_branch
      %22 = sbr.rel (0) target = $region21
    $region20: #{tpu_custom_call.1} parent=1 // pred_region
      _
    $region21: #{tpu_custom_call.1} parent=1 // pred_fallthru
      _
    // Predicated region
    $region22: #{tpu_custom_call.1} parent=1 // pred_check
      _
    $region23: #{tpu_custom_call.1} parent=1 // pred_check_branch
      %24 = sbr.rel (0) target = $region25
    $region24: #{tpu_custom_call.1} parent=1 // pred_region
      _
    $region25: #{tpu_custom_call.1} parent=1 // pred_fallthru
      _
    // Predicated region
    $region26: #{tpu_custom_call.1} parent=1 // pred_check
      _
    $region27: #{tpu_custom_call.1} parent=1 // pred_check_branch
      %26 = sbr.rel (0) target = $region29
    $region28: #{tpu_custom_call.1} parent=1 // pred_region
      _
    $region29: #{tpu_custom_call.1} parent=1 // pred_fallthru
      _
    %v28 = vld [vmem:[%s0] sm:$0xff]
    %v29 = vld [vmem:[%s0 + $0x8] sm:$0xff]
    %v30 = vld [vmem:[%s0 + $0x10] sm:$0xff]
    %v31 = vld [vmem:[%s0 + $0x18] sm:$0xff]
    %v32 = vld [vmem:[%s0 + $0x20] sm:$0xff]
    %v33 = vld [vmem:[%s0 + $0x28] sm:$0xff]
    %v34 = vld [vmem:[%s0 + $0x30] sm:$0xff]
    %v35 = vld [vmem:[%s0 + $0x38] sm:$0xff]
    %v36 = vld [vmem:[%s0 + $0x40] sm:$0xff]
    %v37 = vld [vmem:[%s0 + $0x48] sm:$0xff]
    %v38 = vld [vmem:[%s0 + $0x50] sm:$0xff]
    %v39 = vld [vmem:[%s0 + $0x58] sm:$0xff]
    %v40 = vld [vmem:[%s0 + $0x60] sm:$0xff]
    %v41 = vld [vmem:[%s0 + $0x68] sm:$0xff]
    %v42 = vld [vmem:[%s0 + $0x70] sm:$0xff]
    %v43 = vld [vmem:[%s0 + $0x78] sm:$0xff]
    %v44 = vld [vmem:[%s0 + $0x80] sm:$0xff]
    %v45 = vld [vmem:[%s0 + $0x88] sm:$0xff]
    %v46 = vld [vmem:[%s0 + $0x90] sm:$0xff]
    %v47 = vld [vmem:[%s0 + $0x98] sm:$0xff]
    %v48 = vld [vmem:[%s0 + $0xa0] sm:$0xff]
    %v49 = vld [vmem:[%s0 + $0xa8] sm:$0xff]
    %v50 = vld [vmem:[%s0 + $0xb0] sm:$0xff]
    %v51 = vld [vmem:[%s0 + $0xb8] sm:$0xff]
    %v52 = vld [vmem:[%s0 + $0xc0] sm:$0xff]
    %v53 = vld [vmem:[%s0 + $0xc8] sm:$0xff]
    %v54 = vld [vmem:[%s0 + $0xd0] sm:$0xff]
    %v55 = vld [vmem:[%s0 + $0xd8] sm:$0xff]
    %v56 = vld [vmem:[%s0 + $0xe0] sm:$0xff]
    %v57 = vld [vmem:[%s0 + $0xe8] sm:$0xff]
    %v58 = vld [vmem:[%s0 + $0xf0] sm:$0xff]
    %v59 = vld [vmem:[%s0 + $0xf8] sm:$0xff]
    %v60 = vpack.c.bf16 %v29, %v28
    %v61 = vpack.c.bf16 %v31, %v30
    %v62 = vpack.c.bf16 %v33, %v32
    %v63 = vpack.c.bf16 %v35, %v34
    %v64 = vpack.c.bf16 %v37, %v36
    %v65 = vpack.c.bf16 %v39, %v38
    %v66 = vpack.c.bf16 %v41, %v40
    %v67 = vpack.c.bf16 %v43, %v42
    %v68 = vpack.c.bf16 %v45, %v44
    %v69 = vpack.c.bf16 %v47, %v46
    %v70 = vpack.c.bf16 %v49, %v48
    %v71 = vpack.c.bf16 %v51, %v50
    %v72 = vpack.c.bf16 %v53, %v52
    %v73 = vpack.c.bf16 %v55, %v54
    %v74 = vpack.c.bf16 %v57, %v56
    %v75 = vpack.c.bf16 %v59, %v58
    %v76 = vld [vmem:[%s1] sm:$0xf]
    %v77 = vld [vmem:[%s1 + $0x4] sm:$0xf]
    %v78 = vld [vmem:[%s1 + $0x8] sm:$0xf]
    %v79 = vld [vmem:[%s1 + $0xc] sm:$0xf]
    %v80 = vld [vmem:[%s2] sm:$0x1]
    %v82 = vlaneseq
    %v83 = vshrl.u32 %v82, 7
    %v84 = vsub.s32 0, %v83
    %v85 = vrot.slane %v80, %v84
    %v91 = vunpack.c.l.b16 %v76
    %v92 = vunpack.c.l.b16 %v77
    %v93 = vunpack.c.l.b16 %v78
    %v94 = vunpack.c.l.b16 %v79
    %v95 = vpack.c.b16 %v92, %v91
    %v96 = vpack.c.b16 %v94, %v93
    %vm99 = vcmask 261120
    %v101 = vsel %vm99, %v60, 0
    %v104 = vsel %vm99, %v61, 0
    %v107 = vsel %vm99, %v62, 0
    %v110 = vsel %vm99, %v63, 0
    %v113 = vsel %vm99, %v64, 0
    %v116 = vsel %vm99, %v65, 0
    %v119 = vsel %vm99, %v66, 0
    %v122 = vsel %vm99, %v67, 0
    %v125 = vsel %vm99, %v68, 0
    %v128 = vsel %vm99, %v69, 0
    %v131 = vsel %vm99, %v70, 0
    %v134 = vsel %vm99, %v71, 0
    %v137 = vsel %vm99, %v72, 0
    %v140 = vsel %vm99, %v73, 0
    %v143 = vsel %vm99, %v74, 0
    %v146 = vsel %vm99, %v75, 0
    %148 = vmatprep.subr.bf16.mxu0 0
    %149 = vmatpush1.bf16.msra.mxu0 0
    %150 = vmatprep.subr.bf16.mxu0 0
    %151 = vmatpush1.bf16.msra.mxu0 0
    %152 = vmatprep.subr.bf16.mxu0 0
    %153 = vmatpush1.bf16.msra.mxu0 0
    %154 = vmatprep.subr.bf16.mxu0 0
    %155 = vmatpush1.bf16.msra.mxu0 0
    %156 = vmatprep.subr.bf16.mxu0 0
    %157 = vmatpush1.bf16.msra.mxu0 0
    %158 = vmatprep.subr.bf16.mxu0 0
    %159 = vmatpush1.bf16.msra.mxu0 0
    %160 = vmatprep.subr.bf16.mxu0 0
    %161 = vmatpush1.bf16.msra.mxu0 %v96
    %162 = vmatprep.subr.bf16.mxu0 0
    %163 = vmatpush1.bf16.msra.mxu0 %v95
    %164 = vmatprep.subr.bf16.mxu0 0
    %165 = vmatpush2.bf16.msra.mxu0 0
    %166 = vmatprep.subr.bf16.mxu0 0
    %167 = vmatpush2.bf16.msra.mxu0 0
    %168 = vmatprep.subr.bf16.mxu0 0
    %169 = vmatpush2.bf16.msra.mxu0 0
    %170 = vmatprep.subr.bf16.mxu0 0
    %171 = vmatpush2.bf16.msra.mxu0 0
    %172 = vmatprep.subr.bf16.mxu0 0
    %173 = vmatpush2.bf16.msra.mxu0 0
    %174 = vmatprep.subr.bf16.mxu0 0
    %175 = vmatpush2.bf16.msra.mxu0 0
    %176 = vmatprep.subr.bf16.mxu0 0
    %177 = vmatpush2.bf16.msra.mxu0 0
    %178 = vmatprep.subr.bf16.mxu0 0
    %179 = vmatpush2.bf16.msra.mxu0 0
    %180 = vmatprep.mubr.bf16.mxu0 0
    %181 = vmatmul.mubr.bf16.gmra.mxu0 %v101
    %v182 = vpop.f32.mrf.mxu0
    %v183 = vadd.f32 %v85, %v182
    %v184 = vpop.f32.mrf.mxu0
    %v185 = vpop.f32.mrf.mxu0
    %v186 = vadd.f32 %v85, %v185
    %v187 = vpop.f32.mrf.mxu0
    %188 = vmatprep.mubr.bf16.mxu0 0
    %189 = vmatmul.mubr.bf16.gmra.mxu0 %v104
    %v190 = vpop.f32.mrf.mxu0
    %v191 = vadd.f32 %v85, %v190
    %v192 = vpop.f32.mrf.mxu0
    %v193 = vpop.f32.mrf.mxu0
    %v194 = vadd.f32 %v85, %v193
    %v195 = vpop.f32.mrf.mxu0
    %196 = vmatprep.mubr.bf16.mxu0 0
    %197 = vmatmul.mubr.bf16.gmra.mxu0 %v107
    %v198 = vpop.f32.mrf.mxu0
    %v199 = vadd.f32 %v85, %v198
    %v200 = vpop.f32.mrf.mxu0
    %v201 = vpop.f32.mrf.mxu0
    %v202 = vadd.f32 %v85, %v201
    %v203 = vpop.f32.mrf.mxu0
    %204 = vmatprep.mubr.bf16.mxu0 0
    %205 = vmatmul.mubr.bf16.gmra.mxu0 %v110
    %v206 = vpop.f32.mrf.mxu0
    %v207 = vadd.f32 %v85, %v206
    %v208 = vpop.f32.mrf.mxu0
    %v209 = vpop.f32.mrf.mxu0
    %v210 = vadd.f32 %v85, %v209
    %v211 = vpop.f32.mrf.mxu0
    %212 = vmatprep.mubr.bf16.mxu0 0
    %213 = vmatmul.mubr.bf16.gmra.mxu0 %v113
    %v214 = vpop.f32.mrf.mxu0
    %v215 = vadd.f32 %v85, %v214
    %v216 = vpop.f32.mrf.mxu0
    %v217 = vpop.f32.mrf.mxu0
    %v218 = vadd.f32 %v85, %v217
    %v219 = vpop.f32.mrf.mxu0
    %220 = vmatprep.mubr.bf16.mxu0 0
    %221 = vmatmul.mubr.bf16.gmra.mxu0 %v116
    %v222 = vpop.f32.mrf.mxu0
    %v223 = vadd.f32 %v85, %v222
    %v224 = vpop.f32.mrf.mxu0
    %v225 = vpop.f32.mrf.mxu0
    %v226 = vadd.f32 %v85, %v225
    %v227 = vpop.f32.mrf.mxu0
    %228 = vmatprep.mubr.bf16.mxu0 0
    %229 = vmatmul.mubr.bf16.gmra.mxu0 %v119
    %v230 = vpop.f32.mrf.mxu0
    %v231 = vadd.f32 %v85, %v230
    %v232 = vpop.f32.mrf.mxu0
    %v233 = vpop.f32.mrf.mxu0
    %v234 = vadd.f32 %v85, %v233
    %v235 = vpop.f32.mrf.mxu0
    %236 = vmatprep.mubr.bf16.mxu0 0
    %237 = vmatmul.mubr.bf16.gmra.mxu0 %v122
    %v238 = vpop.f32.mrf.mxu0
    %v239 = vadd.f32 %v85, %v238
    %v240 = vpop.f32.mrf.mxu0
    %v241 = vpop.f32.mrf.mxu0
    %v242 = vadd.f32 %v85, %v241
    %v243 = vpop.f32.mrf.mxu0
    %244 = vmatprep.mubr.bf16.mxu0 0
    %245 = vmatmul.mubr.bf16.gmra.mxu0 %v125
    %v246 = vpop.f32.mrf.mxu0
    %v247 = vadd.f32 %v85, %v246
    %v248 = vpop.f32.mrf.mxu0
    %v249 = vpop.f32.mrf.mxu0
    %v250 = vadd.f32 %v85, %v249
    %v251 = vpop.f32.mrf.mxu0
    %252 = vmatprep.mubr.bf16.mxu0 0
    %253 = vmatmul.mubr.bf16.gmra.mxu0 %v128
    %v254 = vpop.f32.mrf.mxu0
    %v255 = vadd.f32 %v85, %v254
    %v256 = vpop.f32.mrf.mxu0
    %v257 = vpop.f32.mrf.mxu0
    %v258 = vadd.f32 %v85, %v257
    %v259 = vpop.f32.mrf.mxu0
    %260 = vmatprep.mubr.bf16.mxu0 0
    %261 = vmatmul.mubr.bf16.gmra.mxu0 %v131
    %v262 = vpop.f32.mrf.mxu0
    %v263 = vadd.f32 %v85, %v262
    %v264 = vpop.f32.mrf.mxu0
    %v265 = vpop.f32.mrf.mxu0
    %v266 = vadd.f32 %v85, %v265
    %v267 = vpop.f32.mrf.mxu0
    %268 = vmatprep.mubr.bf16.mxu0 0
    %269 = vmatmul.mubr.bf16.gmra.mxu0 %v134
    %v270 = vpop.f32.mrf.mxu0
    %v271 = vadd.f32 %v85, %v270
    %v272 = vpop.f32.mrf.mxu0
    %v273 = vpop.f32.mrf.mxu0
    %v274 = vadd.f32 %v85, %v273
    %v275 = vpop.f32.mrf.mxu0
    %276 = vmatprep.mubr.bf16.mxu0 0
    %277 = vmatmul.mubr.bf16.gmra.mxu0 %v137
    %v278 = vpop.f32.mrf.mxu0
    %v279 = vadd.f32 %v85, %v278
    %v280 = vpop.f32.mrf.mxu0
    %v281 = vpop.f32.mrf.mxu0
    %v282 = vadd.f32 %v85, %v281
    %v283 = vpop.f32.mrf.mxu0
    %284 = vmatprep.mubr.bf16.mxu0 0
    %285 = vmatmul.mubr.bf16.gmra.mxu0 %v140
    %v286 = vpop.f32.mrf.mxu0
    %v287 = vadd.f32 %v85, %v286
    %v288 = vpop.f32.mrf.mxu0
    %v289 = vpop.f32.mrf.mxu0
    %v290 = vadd.f32 %v85, %v289
    %v291 = vpop.f32.mrf.mxu0
    %292 = vmatprep.mubr.bf16.mxu0 0
    %293 = vmatmul.mubr.bf16.gmra.mxu0 %v143
    %v294 = vpop.f32.mrf.mxu0
    %v295 = vadd.f32 %v85, %v294
    %v296 = vpop.f32.mrf.mxu0
    %v297 = vpop.f32.mrf.mxu0
    %v298 = vadd.f32 %v85, %v297
    %v299 = vpop.f32.mrf.mxu0
    %300 = vmatprep.mubr.bf16.mxu0 0
    %301 = vmatmul.mubr.bf16.gmra.mxu0 %v146
    %v302 = vpop.f32.mrf.mxu0
    %v303 = vadd.f32 %v85, %v302
    %v304 = vpop.f32.mrf.mxu0
    %v305 = vpop.f32.mrf.mxu0
    %v306 = vadd.f32 %v85, %v305
    %v307 = vpop.f32.mrf.mxu0
    %308 = vdwg.mxu0
    %v309 = vmul.f32 %v183, 0.2
    %v310 = vmul.f32 %v186, 0.2
    %v311 = vmul.f32 %v191, 0.2
    %v312 = vmul.f32 %v194, 0.2
    %v313 = vmul.f32 %v199, 0.2
    %v314 = vmul.f32 %v202, 0.2
    %v315 = vmul.f32 %v207, 0.2
    %v316 = vmul.f32 %v210, 0.2
    %v317 = vmul.f32 %v215, 0.2
    %v318 = vmul.f32 %v218, 0.2
    %v319 = vmul.f32 %v223, 0.2
    %v320 = vmul.f32 %v226, 0.2
    %v321 = vmul.f32 %v231, 0.2
    %v322 = vmul.f32 %v234, 0.2
    %v323 = vmul.f32 %v239, 0.2
    %v324 = vmul.f32 %v242, 0.2
    %v325 = vmul.f32 %v247, 0.2
    %v326 = vmul.f32 %v250, 0.2
    %v327 = vmul.f32 %v255, 0.2
    %v328 = vmul.f32 %v258, 0.2
    %v329 = vmul.f32 %v263, 0.2
    %v330 = vmul.f32 %v266, 0.2
    %v331 = vmul.f32 %v271, 0.2
    %v332 = vmul.f32 %v274, 0.2
    %v333 = vmul.f32 %v279, 0.2
    %v334 = vmul.f32 %v282, 0.2
    %v335 = vmul.f32 %v287, 0.2
    %v336 = vmul.f32 %v290, 0.2
    %v337 = vmul.f32 %v295, 0.2
    %v338 = vmul.f32 %v298, 0.2
    %v339 = vmul.f32 %v303, 0.2
    %v340 = vmul.f32 %v306, 0.2
    %v341 = vmax.f32 %v183, %v309
    %v342 = vmax.f32 %v186, %v310
    %v343 = vmax.f32 %v191, %v311
    %v344 = vmax.f32 %v194, %v312
    %v345 = vmax.f32 %v199, %v313
    %v346 = vmax.f32 %v202, %v314
    %v347 = vmax.f32 %v207, %v315
    %v348 = vmax.f32 %v210, %v316
    %v349 = vmax.f32 %v215, %v317
    %v350 = vmax.f32 %v218, %v318
    %v351 = vmax.f32 %v223, %v319
    %v352 = vmax.f32 %v226, %v320
    %v353 = vmax.f32 %v231, %v321
    %v354 = vmax.f32 %v234, %v322
    %v355 = vmax.f32 %v239, %v323
    %v356 = vmax.f32 %v242, %v324
    %v357 = vmax.f32 %v247, %v325
    %v358 = vmax.f32 %v250, %v326
    %v359 = vmax.f32 %v255, %v327
    %v360 = vmax.f32 %v258, %v328
    %v361 = vmax.f32 %v263, %v329
    %v362 = vmax.f32 %v266, %v330
    %v363 = vmax.f32 %v271, %v331
    %v364 = vmax.f32 %v274, %v332
    %v365 = vmax.f32 %v279, %v333
    %v366 = vmax.f32 %v282, %v334
    %v367 = vmax.f32 %v287, %v335
    %v368 = vmax.f32 %v290, %v336
    %v369 = vmax.f32 %v295, %v337
    %v370 = vmax.f32 %v298, %v338
    %v371 = vmax.f32 %v303, %v339
    %v372 = vmax.f32 %v306, %v340
    %v373 = vpack.c.bf16 %v342, %v341
    %v374 = vpack.c.bf16 %v344, %v343
    %v375 = vpack.c.bf16 %v346, %v345
    %v376 = vpack.c.bf16 %v348, %v347
    %v377 = vpack.c.bf16 %v350, %v349
    %v378 = vpack.c.bf16 %v352, %v351
    %v379 = vpack.c.bf16 %v354, %v353
    %v380 = vpack.c.bf16 %v356, %v355
    %v381 = vpack.c.bf16 %v358, %v357
    %v382 = vpack.c.bf16 %v360, %v359
    %v383 = vpack.c.bf16 %v362, %v361
    %v384 = vpack.c.bf16 %v364, %v363
    %v385 = vpack.c.bf16 %v366, %v365
    %v386 = vpack.c.bf16 %v368, %v367
    %v387 = vpack.c.bf16 %v370, %v369
    %v388 = vpack.c.bf16 %v372, %v371
    %v389 = vld [vmem:[%s3] sm:$0xf]
    %v390 = vld [vmem:[%s3 + $0x4] sm:$0xf]
    %v391 = vld [vmem:[%s3 + $0x8] sm:$0xf]
    %v392 = vld [vmem:[%s3 + $0xc] sm:$0xf]
    %v393 = vld [vmem:[%s3 + $0x10] sm:$0xf]
    %v394 = vld [vmem:[%s3 + $0x14] sm:$0xf]
    %v395 = vld [vmem:[%s3 + $0x18] sm:$0xf]
    %v396 = vld [vmem:[%s3 + $0x1c] sm:$0xf]
    %v397 = vld [vmem:[%s3 + $0x20] sm:$0xf]
    %v398 = vld [vmem:[%s3 + $0x24] sm:$0xf]
    %v399 = vld [vmem:[%s3 + $0x28] sm:$0xf]
    %v400 = vld [vmem:[%s3 + $0x2c] sm:$0xf]
    %v401 = vld [vmem:[%s3 + $0x30] sm:$0xf]
    %v402 = vld [vmem:[%s3 + $0x34] sm:$0xf]
    %v403 = vld [vmem:[%s3 + $0x38] sm:$0xf]
    %v404 = vld [vmem:[%s3 + $0x3c] sm:$0xf]
    %v405 = vld [vmem:[%s4] sm:$0x1]
    %v407 = vlaneseq
    %v408 = vshrl.u32 %v407, 7
    %v409 = vsub.s32 0, %v408
    %v410 = vrot.slane %v405, %v409
    %v428 = vunpack.c.l.b16 %v389
    %v429 = vunpack.c.l.b16 %v390
    %v430 = vunpack.c.l.b16 %v391
    %v431 = vunpack.c.l.b16 %v392
    %v432 = vunpack.c.l.b16 %v393
    %v433 = vunpack.c.l.b16 %v394
    %v434 = vunpack.c.l.b16 %v395
    %v435 = vunpack.c.l.b16 %v396
    %v436 = vunpack.c.l.b16 %v397
    %v437 = vunpack.c.l.b16 %v398
    %v438 = vunpack.c.l.b16 %v399
    %v439 = vunpack.c.l.b16 %v400
    %v440 = vunpack.c.l.b16 %v401
    %v441 = vunpack.c.l.b16 %v402
    %v442 = vunpack.c.l.b16 %v403
    %v443 = vunpack.c.l.b16 %v404
    %v444 = vpack.c.b16 %v429, %v428
    %v445 = vpack.c.b16 %v431, %v430
    %v446 = vpack.c.b16 %v433, %v432
    %v447 = vpack.c.b16 %v435, %v434
    %v448 = vpack.c.b16 %v437, %v436
    %v449 = vpack.c.b16 %v439, %v438
    %v450 = vpack.c.b16 %v441, %v440
    %v451 = vpack.c.b16 %v443, %v442
    %460 = vmatprep.subr.bf16.mxu0 0
    %461 = vmatpush1.bf16.msra.mxu0 %v451
    %462 = vmatprep.subr.bf16.mxu0 0
    %463 = vmatpush1.bf16.msra.mxu0 %v450
    %464 = vmatprep.subr.bf16.mxu0 0
    %465 = vmatpush1.bf16.msra.mxu0 %v449
    %466 = vmatprep.subr.bf16.mxu0 0
    %467 = vmatpush1.bf16.msra.mxu0 %v448
    %468 = vmatprep.subr.bf16.mxu0 0
    %469 = vmatpush1.bf16.msra.mxu0 %v447
    %470 = vmatprep.subr.bf16.mxu0 0
    %471 = vmatpush1.bf16.msra.mxu0 %v446
    %472 = vmatprep.subr.bf16.mxu0 0
    %473 = vmatpush1.bf16.msra.mxu0 %v445
    %474 = vmatprep.subr.bf16.mxu0 0
    %475 = vmatpush1.bf16.msra.mxu0 %v444
    %476 = vmatprep.subr.bf16.mxu0 0
    %477 = vmatpush2.bf16.msra.mxu0 0
    %478 = vmatprep.subr.bf16.mxu0 0
    %479 = vmatpush2.bf16.msra.mxu0 0
    %480 = vmatprep.subr.bf16.mxu0 0
    %481 = vmatpush2.bf16.msra.mxu0 0
    %482 = vmatprep.subr.bf16.mxu0 0
    %483 = vmatpush2.bf16.msra.mxu0 0
    %484 = vmatprep.subr.bf16.mxu0 0
    %485 = vmatpush2.bf16.msra.mxu0 0
    %486 = vmatprep.subr.bf16.mxu0 0
    %487 = vmatpush2.bf16.msra.mxu0 0
    %488 = vmatprep.subr.bf16.mxu0 0
    %489 = vmatpush2.bf16.msra.mxu0 0
    %490 = vmatprep.subr.bf16.mxu0 0
    %491 = vmatpush2.bf16.msra.mxu0 0
    %492 = vmatprep.mubr.bf16.mxu0 0
    %493 = vmatmul.mubr.bf16.gmra.mxu0 %v373
    %v494 = vpop.f32.mrf.mxu0
    %v495 = vadd.f32 %v410, %v494
    %v496 = vpop.f32.mrf.mxu0
    %v497 = vpop.f32.mrf.mxu0
    %v498 = vadd.f32 %v410, %v497
    %v499 = vpop.f32.mrf.mxu0
    %500 = vmatprep.mubr.bf16.mxu0 0
    %501 = vmatmul.mubr.bf16.gmra.mxu0 %v374
    %v502 = vpop.f32.mrf.mxu0
    %v503 = vadd.f32 %v410, %v502
    %v504 = vpop.f32.mrf.mxu0
    %v505 = vpop.f32.mrf.mxu0
    %v506 = vadd.f32 %v410, %v505
    %v507 = vpop.f32.mrf.mxu0
    %508 = vmatprep.mubr.bf16.mxu0 0
    %509 = vmatmul.mubr.bf16.gmra.mxu0 %v375
    %v510 = vpop.f32.mrf.mxu0
    %v511 = vadd.f32 %v410, %v510
    %v512 = vpop.f32.mrf.mxu0
    %v513 = vpop.f32.mrf.mxu0
    %v514 = vadd.f32 %v410, %v513
    %v515 = vpop.f32.mrf.mxu0
    %516 = vmatprep.mubr.bf16.mxu0 0
    %517 = vmatmul.mubr.bf16.gmra.mxu0 %v376
    %v518 = vpop.f32.mrf.mxu0
    %v519 = vadd.f32 %v410, %v518
    %v520 = vpop.f32.mrf.mxu0
    %v521 = vpop.f32.mrf.mxu0
    %v522 = vadd.f32 %v410, %v521
    %v523 = vpop.f32.mrf.mxu0
    %524 = vmatprep.mubr.bf16.mxu0 0
    %525 = vmatmul.mubr.bf16.gmra.mxu0 %v377
    %v526 = vpop.f32.mrf.mxu0
    %v527 = vadd.f32 %v410, %v526
    %v528 = vpop.f32.mrf.mxu0
    %v529 = vpop.f32.mrf.mxu0
    %v530 = vadd.f32 %v410, %v529
    %v531 = vpop.f32.mrf.mxu0
    %532 = vmatprep.mubr.bf16.mxu0 0
    %533 = vmatmul.mubr.bf16.gmra.mxu0 %v378
    %v534 = vpop.f32.mrf.mxu0
    %v535 = vadd.f32 %v410, %v534
    %v536 = vpop.f32.mrf.mxu0
    %v537 = vpop.f32.mrf.mxu0
    %v538 = vadd.f32 %v410, %v537
    %v539 = vpop.f32.mrf.mxu0
    %540 = vmatprep.mubr.bf16.mxu0 0
    %541 = vmatmul.mubr.bf16.gmra.mxu0 %v379
    %v542 = vpop.f32.mrf.mxu0
    %v543 = vadd.f32 %v410, %v542
    %v544 = vpop.f32.mrf.mxu0
    %v545 = vpop.f32.mrf.mxu0
    %v546 = vadd.f32 %v410, %v545
    %v547 = vpop.f32.mrf.mxu0
    %548 = vmatprep.mubr.bf16.mxu0 0
    %549 = vmatmul.mubr.bf16.gmra.mxu0 %v380
    %v550 = vpop.f32.mrf.mxu0
    %v551 = vadd.f32 %v410, %v550
    %v552 = vpop.f32.mrf.mxu0
    %v553 = vpop.f32.mrf.mxu0
    %v554 = vadd.f32 %v410, %v553
    %v555 = vpop.f32.mrf.mxu0
    %556 = vmatprep.mubr.bf16.mxu0 0
    %557 = vmatmul.mubr.bf16.gmra.mxu0 %v381
    %v558 = vpop.f32.mrf.mxu0
    %v559 = vadd.f32 %v410, %v558
    %v560 = vpop.f32.mrf.mxu0
    %v561 = vpop.f32.mrf.mxu0
    %v562 = vadd.f32 %v410, %v561
    %v563 = vpop.f32.mrf.mxu0
    %564 = vmatprep.mubr.bf16.mxu0 0
    %565 = vmatmul.mubr.bf16.gmra.mxu0 %v382
    %v566 = vpop.f32.mrf.mxu0
    %v567 = vadd.f32 %v410, %v566
    %v568 = vpop.f32.mrf.mxu0
    %v569 = vpop.f32.mrf.mxu0
    %v570 = vadd.f32 %v410, %v569
    %v571 = vpop.f32.mrf.mxu0
    %572 = vmatprep.mubr.bf16.mxu0 0
    %573 = vmatmul.mubr.bf16.gmra.mxu0 %v383
    %v574 = vpop.f32.mrf.mxu0
    %v575 = vadd.f32 %v410, %v574
    %v576 = vpop.f32.mrf.mxu0
    %v577 = vpop.f32.mrf.mxu0
    %v578 = vadd.f32 %v410, %v577
    %v579 = vpop.f32.mrf.mxu0
    %580 = vmatprep.mubr.bf16.mxu0 0
    %581 = vmatmul.mubr.bf16.gmra.mxu0 %v384
    %v582 = vpop.f32.mrf.mxu0
    %v583 = vadd.f32 %v410, %v582
    %v584 = vpop.f32.mrf.mxu0
    %v585 = vpop.f32.mrf.mxu0
    %v586 = vadd.f32 %v410, %v585
    %v587 = vpop.f32.mrf.mxu0
    %588 = vmatprep.mubr.bf16.mxu0 0
    %589 = vmatmul.mubr.bf16.gmra.mxu0 %v385
    %v590 = vpop.f32.mrf.mxu0
    %v591 = vadd.f32 %v410, %v590
    %v592 = vpop.f32.mrf.mxu0
    %v593 = vpop.f32.mrf.mxu0
    %v594 = vadd.f32 %v410, %v593
    %v595 = vpop.f32.mrf.mxu0
    %596 = vmatprep.mubr.bf16.mxu0 0
    %597 = vmatmul.mubr.bf16.gmra.mxu0 %v386
    %v598 = vpop.f32.mrf.mxu0
    %v599 = vadd.f32 %v410, %v598
    %v600 = vpop.f32.mrf.mxu0
    %v601 = vpop.f32.mrf.mxu0
    %v602 = vadd.f32 %v410, %v601
    %v603 = vpop.f32.mrf.mxu0
    %604 = vmatprep.mubr.bf16.mxu0 0
    %605 = vmatmul.mubr.bf16.gmra.mxu0 %v387
    %v606 = vpop.f32.mrf.mxu0
    %v607 = vadd.f32 %v410, %v606
    %v608 = vpop.f32.mrf.mxu0
    %v609 = vpop.f32.mrf.mxu0
    %v610 = vadd.f32 %v410, %v609
    %v611 = vpop.f32.mrf.mxu0
    %612 = vmatprep.mubr.bf16.mxu0 0
    %613 = vmatmul.mubr.bf16.gmra.mxu0 %v388
    %v614 = vpop.f32.mrf.mxu0
    %v615 = vadd.f32 %v410, %v614
    %v616 = vpop.f32.mrf.mxu0
    %v617 = vpop.f32.mrf.mxu0
    %v618 = vadd.f32 %v410, %v617
    %v619 = vpop.f32.mrf.mxu0
    %620 = vdwg.mxu0
    %v621 = vmul.f32 %v495, 0.2
    %v622 = vmul.f32 %v498, 0.2
    %v623 = vmul.f32 %v503, 0.2
    %v624 = vmul.f32 %v506, 0.2
    %v625 = vmul.f32 %v511, 0.2
    %v626 = vmul.f32 %v514, 0.2
    %v627 = vmul.f32 %v519, 0.2
    %v628 = vmul.f32 %v522, 0.2
    %v629 = vmul.f32 %v527, 0.2
    %v630 = vmul.f32 %v530, 0.2
    %v631 = vmul.f32 %v535, 0.2
    %v632 = vmul.f32 %v538, 0.2
    %v633 = vmul.f32 %v543, 0.2
    %v634 = vmul.f32 %v546, 0.2
    %v635 = vmul.f32 %v551, 0.2
    %v636 = vmul.f32 %v554, 0.2
    %v637 = vmul.f32 %v559, 0.2
    %v638 = vmul.f32 %v562, 0.2
    %v639 = vmul.f32 %v567, 0.2
    %v640 = vmul.f32 %v570, 0.2
    %v641 = vmul.f32 %v575, 0.2
    %v642 = vmul.f32 %v578, 0.2
    %v643 = vmul.f32 %v583, 0.2
    %v644 = vmul.f32 %v586, 0.2
    %v645 = vmul.f32 %v591, 0.2
    %v646 = vmul.f32 %v594, 0.2
    %v647 = vmul.f32 %v599, 0.2
    %v648 = vmul.f32 %v602, 0.2
    %v649 = vmul.f32 %v607, 0.2
    %v650 = vmul.f32 %v610, 0.2
    %v651 = vmul.f32 %v615, 0.2
    %v652 = vmul.f32 %v618, 0.2
    %v653 = vmax.f32 %v495, %v621
    %v654 = vmax.f32 %v498, %v622
    %v655 = vmax.f32 %v503, %v623
    %v656 = vmax.f32 %v506, %v624
    %v657 = vmax.f32 %v511, %v625
    %v658 = vmax.f32 %v514, %v626
    %v659 = vmax.f32 %v519, %v627
    %v660 = vmax.f32 %v522, %v628
    %v661 = vmax.f32 %v527, %v629
    %v662 = vmax.f32 %v530, %v630
    %v663 = vmax.f32 %v535, %v631
    %v664 = vmax.f32 %v538, %v632
    %v665 = vmax.f32 %v543, %v633
    %v666 = vmax.f32 %v546, %v634
    %v667 = vmax.f32 %v551, %v635
    %v668 = vmax.f32 %v554, %v636
    %v669 = vmax.f32 %v559, %v637
    %v670 = vmax.f32 %v562, %v638
    %v671 = vmax.f32 %v567, %v639
    %v672 = vmax.f32 %v570, %v640
    %v673 = vmax.f32 %v575, %v641
    %v674 = vmax.f32 %v578, %v642
    %v675 = vmax.f32 %v583, %v643
    %v676 = vmax.f32 %v586, %v644
    %v677 = vmax.f32 %v591, %v645
    %v678 = vmax.f32 %v594, %v646
    %v679 = vmax.f32 %v599, %v647
    %v680 = vmax.f32 %v602, %v648
    %v681 = vmax.f32 %v607, %v649
    %v682 = vmax.f32 %v610, %v650
    %v683 = vmax.f32 %v615, %v651
    %v684 = vmax.f32 %v618, %v652
    %v685 = vpack.c.bf16 %v654, %v653
    %v686 = vpack.c.bf16 %v656, %v655
    %v687 = vpack.c.bf16 %v658, %v657
    %v688 = vpack.c.bf16 %v660, %v659
    %v689 = vpack.c.bf16 %v662, %v661
    %v690 = vpack.c.bf16 %v664, %v663
    %v691 = vpack.c.bf16 %v666, %v665
    %v692 = vpack.c.bf16 %v668, %v667
    %v693 = vpack.c.bf16 %v670, %v669
    %v694 = vpack.c.bf16 %v672, %v671
    %v695 = vpack.c.bf16 %v674, %v673
    %v696 = vpack.c.bf16 %v676, %v675
    %v697 = vpack.c.bf16 %v678, %v677
    %v698 = vpack.c.bf16 %v680, %v679
    %v699 = vpack.c.bf16 %v682, %v681
    %v700 = vpack.c.bf16 %v684, %v683
    %v701 = vld [vmem:[%s5] sm:$0xff]
    %v702 = vld [vmem:[%s5 + $0x8] sm:$0xff]
    %v703 = vld [vmem:[%s5 + $0x10] sm:$0xff]
    %v704 = vld [vmem:[%s5 + $0x18] sm:$0xff]
    %v705 = vld [vmem:[%s5 + $0x20] sm:$0xff]
    %v706 = vld [vmem:[%s5 + $0x28] sm:$0xff]
    %v707 = vld [vmem:[%s5 + $0x30] sm:$0xff]
    %v708 = vld [vmem:[%s5 + $0x38] sm:$0xff]
    %v709 = vld [vmem:[%s5 + $0x40] sm:$0xff]
    %v710 = vld [vmem:[%s5 + $0x48] sm:$0xff]
    %v711 = vld [vmem:[%s5 + $0x50] sm:$0xff]
    %v712 = vld [vmem:[%s5 + $0x58] sm:$0xff]
    %v713 = vld [vmem:[%s5 + $0x60] sm:$0xff]
    %v714 = vld [vmem:[%s5 + $0x68] sm:$0xff]
    %v715 = vld [vmem:[%s5 + $0x70] sm:$0xff]
    %v716 = vld [vmem:[%s5 + $0x78] sm:$0xff]
    %v717 = vld [vmem:[%s6] sm:$0x3]
    %v719 = vlaneseq
    %v720 = vshrl.u32 %v719, 7
    %v721 = vsub.s32 0, %v720
    %v722 = vrot.slane %v717, %v721
    %v723 = vlaneseq
    %v724 = vshrl.u32 %v723, 7
    %v725 = vsub.s32 1, %v724
    %v726 = vrot.slane %v717, %v725
    %v745 = vunpack.c.l.b16 %v701
    %v746 = vunpack.c.h.b16 %v701
    %v747 = vunpack.c.l.b16 %v702
    %v748 = vunpack.c.h.b16 %v702
    %v749 = vunpack.c.l.b16 %v703
    %v750 = vunpack.c.h.b16 %v703
    %v751 = vunpack.c.l.b16 %v704
    %v752 = vunpack.c.h.b16 %v704
    %v753 = vunpack.c.l.b16 %v705
    %v754 = vunpack.c.h.b16 %v705
    %v755 = vunpack.c.l.b16 %v706
    %v756 = vunpack.c.h.b16 %v706
    %v757 = vunpack.c.l.b16 %v707
    %v758 = vunpack.c.h.b16 %v707
    %v759 = vunpack.c.l.b16 %v708
    %v760 = vunpack.c.h.b16 %v708
    %v761 = vunpack.c.l.b16 %v709
    %v762 = vunpack.c.h.b16 %v709
    %v763 = vunpack.c.l.b16 %v710
    %v764 = vunpack.c.h.b16 %v710
    %v765 = vunpack.c.l.b16 %v711
    %v766 = vunpack.c.h.b16 %v711
    %v767 = vunpack.c.l.b16 %v712
    %v768 = vunpack.c.h.b16 %v712
    %v769 = vunpack.c.l.b16 %v713
    %v770 = vunpack.c.h.b16 %v713
    %v771 = vunpack.c.l.b16 %v714
    %v772 = vunpack.c.h.b16 %v714
    %v773 = vunpack.c.l.b16 %v715
    %v774 = vunpack.c.h.b16 %v715
    %v775 = vunpack.c.l.b16 %v716
    %v776 = vunpack.c.h.b16 %v716
    %v777 = vpack.c.b16 %v747, %v745
    %v778 = vpack.c.b16 %v748, %v746
    %v779 = vpack.c.b16 %v751, %v749
    %v780 = vpack.c.b16 %v752, %v750
    %v781 = vpack.c.b16 %v755, %v753
    %v782 = vpack.c.b16 %v756, %v754
    %v783 = vpack.c.b16 %v759, %v757
    %v784 = vpack.c.b16 %v760, %v758
    %v785 = vpack.c.b16 %v763, %v761
    %v786 = vpack.c.b16 %v764, %v762
    %v787 = vpack.c.b16 %v767, %v765
    %v788 = vpack.c.b16 %v768, %v766
    %v789 = vpack.c.b16 %v771, %v769
    %v790 = vpack.c.b16 %v772, %v770
    %v791 = vpack.c.b16 %v775, %v773
    %v792 = vpack.c.b16 %v776, %v774
    %809 = vmatprep.subr.bf16.mxu0 %v792
    %810 = vmatpush1.bf16.msra.mxu0 %v791
    %811 = vmatprep.subr.bf16.mxu0 %v790
    %812 = vmatpush1.bf16.msra.mxu0 %v789
    %813 = vmatprep.subr.bf16.mxu0 %v788
    %814 = vmatpush1.bf16.msra.mxu0 %v787
    %815 = vmatprep.subr.bf16.mxu0 %v786
    %816 = vmatpush1.bf16.msra.mxu0 %v785
    %817 = vmatprep.subr.bf16.mxu0 %v784
    %818 = vmatpush1.bf16.msra.mxu0 %v783
    %819 = vmatprep.subr.bf16.mxu0 %v782
    %820 = vmatpush1.bf16.msra.mxu0 %v781
    %821 = vmatprep.subr.bf16.mxu0 %v780
    %822 = vmatpush1.bf16.msra.mxu0 %v779
    %823 = vmatprep.subr.bf16.mxu0 %v778
    %824 = vmatpush1.bf16.msra.mxu0 %v777
    %825 = vmatprep.subr.bf16.mxu0 0
    %826 = vmatpush2.bf16.msra.mxu0 0
    %827 = vmatprep.subr.bf16.mxu0 0
    %828 = vmatpush2.bf16.msra.mxu0 0
    %829 = vmatprep.subr.bf16.mxu0 0
    %830 = vmatpush2.bf16.msra.mxu0 0
    %831 = vmatprep.subr.bf16.mxu0 0
    %832 = vmatpush2.bf16.msra.mxu0 0
    %833 = vmatprep.subr.bf16.mxu0 0
    %834 = vmatpush2.bf16.msra.mxu0 0
    %835 = vmatprep.subr.bf16.mxu0 0
    %836 = vmatpush2.bf16.msra.mxu0 0
    %837 = vmatprep.subr.bf16.mxu0 0
    %838 = vmatpush2.bf16.msra.mxu0 0
    %839 = vmatprep.subr.bf16.mxu0 0
    %840 = vmatpush2.bf16.msra.mxu0 0
    %841 = vmatprep.mubr.bf16.mxu0 0
    %842 = vmatmul.mubr.bf16.gmra.mxu0 %v685
    %v843 = vpop.f32.mrf.mxu0
    %v844 = vadd.f32 %v722, %v843
    %v845 = vpop.f32.mrf.mxu0
    %v846 = vadd.f32 %v726, %v845
    %v847 = vpop.f32.mrf.mxu0
    %v848 = vadd.f32 %v722, %v847
    %v849 = vpop.f32.mrf.mxu0
    %v850 = vadd.f32 %v726, %v849
    %851 = vmatprep.mubr.bf16.mxu0 0
    %852 = vmatmul.mubr.bf16.gmra.mxu0 %v686
    %v853 = vpop.f32.mrf.mxu0
    %v854 = vadd.f32 %v722, %v853
    %v855 = vpop.f32.mrf.mxu0
    %v856 = vadd.f32 %v726, %v855
    %v857 = vpop.f32.mrf.mxu0
    %v858 = vadd.f32 %v722, %v857
    %v859 = vpop.f32.mrf.mxu0
    %v860 = vadd.f32 %v726, %v859
    %861 = vmatprep.mubr.bf16.mxu0 0
    %862 = vmatmul.mubr.bf16.gmra.mxu0 %v687
    %v863 = vpop.f32.mrf.mxu0
    %v864 = vadd.f32 %v722, %v863
    %v865 = vpop.f32.mrf.mxu0
    %v866 = vadd.f32 %v726, %v865
    %v867 = vpop.f32.mrf.mxu0
    %v868 = vadd.f32 %v722, %v867
    %v869 = vpop.f32.mrf.mxu0
    %v870 = vadd.f32 %v726, %v869
    %871 = vmatprep.mubr.bf16.mxu0 0
    %872 = vmatmul.mubr.bf16.gmra.mxu0 %v688
    %v873 = vpop.f32.mrf.mxu0
    %v874 = vadd.f32 %v722, %v873
    %v875 = vpop.f32.mrf.mxu0
    %v876 = vadd.f32 %v726, %v875
    %v877 = vpop.f32.mrf.mxu0
    %v878 = vadd.f32 %v722, %v877
    %v879 = vpop.f32.mrf.mxu0
    %v880 = vadd.f32 %v726, %v879
    %881 = vmatprep.mubr.bf16.mxu0 0
    %882 = vmatmul.mubr.bf16.gmra.mxu0 %v689
    %v883 = vpop.f32.mrf.mxu0
    %v884 = vadd.f32 %v722, %v883
    %v885 = vpop.f32.mrf.mxu0
    %v886 = vadd.f32 %v726, %v885
    %v887 = vpop.f32.mrf.mxu0
    %v888 = vadd.f32 %v722, %v887
    %v889 = vpop.f32.mrf.mxu0
    %v890 = vadd.f32 %v726, %v889
    %891 = vmatprep.mubr.bf16.mxu0 0
    %892 = vmatmul.mubr.bf16.gmra.mxu0 %v690
    %v893 = vpop.f32.mrf.mxu0
    %v894 = vadd.f32 %v722, %v893
    %v895 = vpop.f32.mrf.mxu0
    %v896 = vadd.f32 %v726, %v895
    %v897 = vpop.f32.mrf.mxu0
    %v898 = vadd.f32 %v722, %v897
    %v899 = vpop.f32.mrf.mxu0
    %v900 = vadd.f32 %v726, %v899
    %901 = vmatprep.mubr.bf16.mxu0 0
    %902 = vmatmul.mubr.bf16.gmra.mxu0 %v691
    %v903 = vpop.f32.mrf.mxu0
    %v904 = vadd.f32 %v722, %v903
    %v905 = vpop.f32.mrf.mxu0
    %v906 = vadd.f32 %v726, %v905
    %v907 = vpop.f32.mrf.mxu0
    %v908 = vadd.f32 %v722, %v907
    %v909 = vpop.f32.mrf.mxu0
    %v910 = vadd.f32 %v726, %v909
    %911 = vmatprep.mubr.bf16.mxu0 0
    %912 = vmatmul.mubr.bf16.gmra.mxu0 %v692
    %v913 = vpop.f32.mrf.mxu0
    %v914 = vadd.f32 %v722, %v913
    %v915 = vpop.f32.mrf.mxu0
    %v916 = vadd.f32 %v726, %v915
    %v917 = vpop.f32.mrf.mxu0
    %v918 = vadd.f32 %v722, %v917
    %v919 = vpop.f32.mrf.mxu0
    %v920 = vadd.f32 %v726, %v919
    %921 = vmatprep.mubr.bf16.mxu0 0
    %922 = vmatmul.mubr.bf16.gmra.mxu0 %v693
    %v923 = vpop.f32.mrf.mxu0
    %v924 = vadd.f32 %v722, %v923
    %v925 = vpop.f32.mrf.mxu0
    %v926 = vadd.f32 %v726, %v925
    %v927 = vpop.f32.mrf.mxu0
    %v928 = vadd.f32 %v722, %v927
    %v929 = vpop.f32.mrf.mxu0
    %v930 = vadd.f32 %v726, %v929
    %931 = vmatprep.mubr.bf16.mxu0 0
    %932 = vmatmul.mubr.bf16.gmra.mxu0 %v694
    %v933 = vpop.f32.mrf.mxu0
    %v934 = vadd.f32 %v722, %v933
    %v935 = vpop.f32.mrf.mxu0
    %v936 = vadd.f32 %v726, %v935
    %v937 = vpop.f32.mrf.mxu0
    %v938 = vadd.f32 %v722, %v937
    %v939 = vpop.f32.mrf.mxu0
    %v940 = vadd.f32 %v726, %v939
    %941 = vmatprep.mubr.bf16.mxu0 0
    %942 = vmatmul.mubr.bf16.gmra.mxu0 %v695
    %v943 = vpop.f32.mrf.mxu0
    %v944 = vadd.f32 %v722, %v943
    %v945 = vpop.f32.mrf.mxu0
    %v946 = vadd.f32 %v726, %v945
    %v947 = vpop.f32.mrf.mxu0
    %v948 = vadd.f32 %v722, %v947
    %v949 = vpop.f32.mrf.mxu0
    %v950 = vadd.f32 %v726, %v949
    %951 = vmatprep.mubr.bf16.mxu0 0
    %952 = vmatmul.mubr.bf16.gmra.mxu0 %v696
    %v953 = vpop.f32.mrf.mxu0
    %v954 = vadd.f32 %v722, %v953
    %v955 = vpop.f32.mrf.mxu0
    %v956 = vadd.f32 %v726, %v955
    %v957 = vpop.f32.mrf.mxu0
    %v958 = vadd.f32 %v722, %v957
    %v959 = vpop.f32.mrf.mxu0
    %v960 = vadd.f32 %v726, %v959
    %961 = vmatprep.mubr.bf16.mxu0 0
    %962 = vmatmul.mubr.bf16.gmra.mxu0 %v697
    %v963 = vpop.f32.mrf.mxu0
    %v964 = vadd.f32 %v722, %v963
    %v965 = vpop.f32.mrf.mxu0
    %v966 = vadd.f32 %v726, %v965
    %v967 = vpop.f32.mrf.mxu0
    %v968 = vadd.f32 %v722, %v967
    %v969 = vpop.f32.mrf.mxu0
    %v970 = vadd.f32 %v726, %v969
    %971 = vmatprep.mubr.bf16.mxu0 0
    %972 = vmatmul.mubr.bf16.gmra.mxu0 %v698
    %v973 = vpop.f32.mrf.mxu0
    %v974 = vadd.f32 %v722, %v973
    %v975 = vpop.f32.mrf.mxu0
    %v976 = vadd.f32 %v726, %v975
    %v977 = vpop.f32.mrf.mxu0
    %v978 = vadd.f32 %v722, %v977
    %v979 = vpop.f32.mrf.mxu0
    %v980 = vadd.f32 %v726, %v979
    %981 = vmatprep.mubr.bf16.mxu0 0
    %982 = vmatmul.mubr.bf16.gmra.mxu0 %v699
    %v983 = vpop.f32.mrf.mxu0
    %v984 = vadd.f32 %v722, %v983
    %v985 = vpop.f32.mrf.mxu0
    %v986 = vadd.f32 %v726, %v985
    %v987 = vpop.f32.mrf.mxu0
    %v988 = vadd.f32 %v722, %v987
    %v989 = vpop.f32.mrf.mxu0
    %v990 = vadd.f32 %v726, %v989
    %991 = vmatprep.mubr.bf16.mxu0 0
    %992 = vmatmul.mubr.bf16.gmra.mxu0 %v700
    %v993 = vpop.f32.mrf.mxu0
    %v994 = vadd.f32 %v722, %v993
    %v995 = vpop.f32.mrf.mxu0
    %v996 = vadd.f32 %v726, %v995
    %v997 = vpop.f32.mrf.mxu0
    %v998 = vadd.f32 %v722, %v997
    %v999 = vpop.f32.mrf.mxu0
    %v1000 = vadd.f32 %v726, %v999
    %1001 = vdwg.mxu0
    %v1002 = vtanh.pop %v844
    %v1003 = vtanh.pop %v846
    %v1004 = vtanh.pop %v848
    %v1005 = vtanh.pop %v850
    %v1006 = vtanh.pop %v854
    %v1007 = vtanh.pop %v856
    %v1008 = vtanh.pop %v858
    %v1009 = vtanh.pop %v860
    %v1010 = vtanh.pop %v864
    %v1011 = vtanh.pop %v866
    %v1012 = vtanh.pop %v868
    %v1013 = vtanh.pop %v870
    %v1014 = vtanh.pop %v874
    %v1015 = vtanh.pop %v876
    %v1016 = vtanh.pop %v878
    %v1017 = vtanh.pop %v880
    %v1018 = vtanh.pop %v884
    %v1019 = vtanh.pop %v886
    %v1020 = vtanh.pop %v888
    %v1021 = vtanh.pop %v890
    %v1022 = vtanh.pop %v894
    %v1023 = vtanh.pop %v896
    %v1024 = vtanh.pop %v898
    %v1025 = vtanh.pop %v900
    %v1026 = vtanh.pop %v904
    %v1027 = vtanh.pop %v906
    %v1028 = vtanh.pop %v908
    %v1029 = vtanh.pop %v910
    %v1030 = vtanh.pop %v914
    %v1031 = vtanh.pop %v916
    %v1032 = vtanh.pop %v918
    %v1033 = vtanh.pop %v920
    %v1034 = vtanh.pop %v924
    %v1035 = vtanh.pop %v926
    %v1036 = vtanh.pop %v928
    %v1037 = vtanh.pop %v930
    %v1038 = vtanh.pop %v934
    %v1039 = vtanh.pop %v936
    %v1040 = vtanh.pop %v938
    %v1041 = vtanh.pop %v940
    %v1042 = vtanh.pop %v944
    %v1043 = vtanh.pop %v946
    %v1044 = vtanh.pop %v948
    %v1045 = vtanh.pop %v950
    %v1046 = vtanh.pop %v954
    %v1047 = vtanh.pop %v956
    %v1048 = vtanh.pop %v958
    %v1049 = vtanh.pop %v960
    %v1050 = vtanh.pop %v964
    %v1051 = vtanh.pop %v966
    %v1052 = vtanh.pop %v968
    %v1053 = vtanh.pop %v970
    %v1054 = vtanh.pop %v974
    %v1055 = vtanh.pop %v976
    %v1056 = vtanh.pop %v978
    %v1057 = vtanh.pop %v980
    %v1058 = vtanh.pop %v984
    %v1059 = vtanh.pop %v986
    %v1060 = vtanh.pop %v988
    %v1061 = vtanh.pop %v990
    %v1062 = vtanh.pop %v994
    %v1063 = vtanh.pop %v996
    %v1064 = vtanh.pop %v998
    %v1065 = vtanh.pop %v1000
    %1066 = vst [vmem:[#allocation2] sm:$0xff] %v1002
    %1067 = vst [vmem:[#allocation2 + $0x8] sm:$0xff] %v1003
    %1068 = vst [vmem:[#allocation2 + $0x10] sm:$0xff] %v1004
    %1069 = vst [vmem:[#allocation2 + $0x18] sm:$0xff] %v1005
    %1070 = vst [vmem:[#allocation2 + $0x20] sm:$0xff] %v1006
    %1071 = vst [vmem:[#allocation2 + $0x28] sm:$0xff] %v1007
    %1072 = vst [vmem:[#allocation2 + $0x30] sm:$0xff] %v1008
    %1073 = vst [vmem:[#allocation2 + $0x38] sm:$0xff] %v1009
    %1074 = vst [vmem:[#allocation2 + $0x40] sm:$0xff] %v1010
    %1075 = vst [vmem:[#allocation2 + $0x48] sm:$0xff] %v1011
    %1076 = vst [vmem:[#allocation2 + $0x50] sm:$0xff] %v1012
    %1077 = vst [vmem:[#allocation2 + $0x58] sm:$0xff] %v1013
    %1078 = vst [vmem:[#allocation2 + $0x60] sm:$0xff] %v1014
    %1079 = vst [vmem:[#allocation2 + $0x68] sm:$0xff] %v1015
    %1080 = vst [vmem:[#allocation2 + $0x70] sm:$0xff] %v1016
    %1081 = vst [vmem:[#allocation2 + $0x78] sm:$0xff] %v1017
    %1082 = vst [vmem:[#allocation2 + $0x80] sm:$0xff] %v1018
    %1083 = vst [vmem:[#allocation2 + $0x88] sm:$0xff] %v1019
    %1084 = vst [vmem:[#allocation2 + $0x90] sm:$0xff] %v1020
    %1085 = vst [vmem:[#allocation2 + $0x98] sm:$0xff] %v1021
    %1086 = vst [vmem:[#allocation2 + $0xa0] sm:$0xff] %v1022
    %1087 = vst [vmem:[#allocation2 + $0xa8] sm:$0xff] %v1023
    %1088 = vst [vmem:[#allocation2 + $0xb0] sm:$0xff] %v1024
    %1089 = vst [vmem:[#allocation2 + $0xb8] sm:$0xff] %v1025
    %1090 = vst [vmem:[#allocation2 + $0xc0] sm:$0xff] %v1026
    %1091 = vst [vmem:[#allocation2 + $0xc8] sm:$0xff] %v1027
    %1092 = vst [vmem:[#allocation2 + $0xd0] sm:$0xff] %v1028
    %1093 = vst [vmem:[#allocation2 + $0xd8] sm:$0xff] %v1029
    %1094 = vst [vmem:[#allocation2 + $0xe0] sm:$0xff] %v1030
    %1095 = vst [vmem:[#allocation2 + $0xe8] sm:$0xff] %v1031
    %1096 = vst [vmem:[#allocation2 + $0xf0] sm:$0xff] %v1032
    %1097 = vst [vmem:[#allocation2 + $0xf8] sm:$0xff] %v1033
    %1098 = vst [vmem:[#allocation2 + $0x100] sm:$0xff] %v1034
    %1099 = vst [vmem:[#allocation2 + $0x108] sm:$0xff] %v1035
    %1100 = vst [vmem:[#allocation2 + $0x110] sm:$0xff] %v1036
    %1101 = vst [vmem:[#allocation2 + $0x118] sm:$0xff] %v1037
    %1102 = vst [vmem:[#allocation2 + $0x120] sm:$0xff] %v1038
    %1103 = vst [vmem:[#allocation2 + $0x128] sm:$0xff] %v1039
    %1104 = vst [vmem:[#allocation2 + $0x130] sm:$0xff] %v1040
    %1105 = vst [vmem:[#allocation2 + $0x138] sm:$0xff] %v1041
    %1106 = vst [vmem:[#allocation2 + $0x140] sm:$0xff] %v1042
    %1107 = vst [vmem:[#allocation2 + $0x148] sm:$0xff] %v1043
    %1108 = vst [vmem:[#allocation2 + $0x150] sm:$0xff] %v1044
    %1109 = vst [vmem:[#allocation2 + $0x158] sm:$0xff] %v1045
    %1110 = vst [vmem:[#allocation2 + $0x160] sm:$0xff] %v1046
    %1111 = vst [vmem:[#allocation2 + $0x168] sm:$0xff] %v1047
    %1112 = vst [vmem:[#allocation2 + $0x170] sm:$0xff] %v1048
    %1113 = vst [vmem:[#allocation2 + $0x178] sm:$0xff] %v1049
    %1114 = vst [vmem:[#allocation2 + $0x180] sm:$0xff] %v1050
    %1115 = vst [vmem:[#allocation2 + $0x188] sm:$0xff] %v1051
    %1116 = vst [vmem:[#allocation2 + $0x190] sm:$0xff] %v1052
    %1117 = vst [vmem:[#allocation2 + $0x198] sm:$0xff] %v1053
    %1118 = vst [vmem:[#allocation2 + $0x1a0] sm:$0xff] %v1054
    %1119 = vst [vmem:[#allocation2 + $0x1a8] sm:$0xff] %v1055
    %1120 = vst [vmem:[#allocation2 + $0x1b0] sm:$0xff] %v1056
    %1121 = vst [vmem:[#allocation2 + $0x1b8] sm:$0xff] %v1057
    %1122 = vst [vmem:[#allocation2 + $0x1c0] sm:$0xff] %v1058
    %1123 = vst [vmem:[#allocation2 + $0x1c8] sm:$0xff] %v1059
    %1124 = vst [vmem:[#allocation2 + $0x1d0] sm:$0xff] %v1060
    %1125 = vst [vmem:[#allocation2 + $0x1d8] sm:$0xff] %v1061
    %1126 = vst [vmem:[#allocation2 + $0x1e0] sm:$0xff] %v1062
    %1127 = vst [vmem:[#allocation2 + $0x1e8] sm:$0xff] %v1063
    %1128 = vst [vmem:[#allocation2 + $0x1f0] sm:$0xff] %v1064
    %1129 = vst [vmem:[#allocation2 + $0x1f8] sm:$0xff] %v1065
    // Predicated region
    $region30: #{tpu_custom_call.1} parent=1 // pred_check
      _
    $region31: #{tpu_custom_call.1} parent=1 // pred_check_branch
      %1131 = sbr.rel (0) target = $region33
    $region32: #{tpu_custom_call.1} parent=1 // pred_region
      %s1133 = ssub.s32 8192, 8192
      %1134 = vsyncadd [#allocation3], %s1133
      %s1135 = sshll.u32 [#allocation2], 4
      %s1136 = int_to_ptr.vmem [resolvable:$true] %s1135
      %1141 = dma.vmem_to_hbm [thread:$0]  %s1136, 8192, %s7, [#allocation3], 256, 256, 16
    $region33: #{tpu_custom_call.1} parent=1 // pred_fallthru
      _
    // Predicated region
    $region34: #{tpu_custom_call.1} parent=1 // pred_check
      _
    $region35: #{tpu_custom_call.1} parent=1 // pred_check_branch
      %1143 = sbr.rel (0) target = $region37
    $region36: #{tpu_custom_call.1} parent=1 // pred_region
      %1144 = dma.done [#allocation3], 8192
    $region37: #{tpu_custom_call.1} parent=1 // pred_fallthru
      _
    %1145 = vsyncpa [#allocation3], 1

// kernel: tpu_custom_call.1
$region0: #{tpu_custom_call.1}
  #allocation0 [shape = 'u32[]', space=smem, size = 0x4, offset = 0x4, fixed_abs, tag = 'smem constant byte address 0x4 - core index']
  #allocation1 [shape = 'u32[144,128]{1,0:T(1,128)}', space=vmem, size = 0x12000, scoped, tag = 'internal scratch']
  %s0 = inlined_call_operand.vmem [shape: f32[256,32], index: 0, kind: input, shape index: {}]
  %s1 = inlined_call_operand.vmem [shape: bf16[32,128], index: 1, kind: input, shape index: {}]
  %s2 = inlined_call_operand.vmem [shape: f32[1,128], index: 2, kind: input, shape index: {}]
  %s3 = inlined_call_operand.vmem [shape: bf16[128,128], index: 3, kind: input, shape index: {}]
  %s4 = inlined_call_operand.vmem [shape: f32[1,128], index: 4, kind: input, shape index: {}]
  %s5 = inlined_call_operand.vmem [shape: bf16[128,256], index: 5, kind: input, shape index: {}]
  %s6 = inlined_call_operand.vmem [shape: f32[1,256], index: 6, kind: input, shape index: {}]
  %s7 = inlined_call_operand.hbm [shape: f32[256,256], index: 7, kind: output, shape index: {}]
  %s8 = sld [smem:[#allocation0]]
  $region38: #{tpu_custom_call.1} parent=0
    _
  %s10 = ssub.s32 1, %s8
  %s11 = scalar_select 0, %s10, %s8
  $region1: #{tpu_custom_call.1} parent=0
    #allocation2 [shape = 'u8[262144]{0}', space=vmem, size = 0x40000, scoped, tag = 'output window, operand 0, single buffered']
    #allocation3 [shape = 's32[1]{0}', space=sflag, size = 0x4, scoped, tag = 'scoped memory for tpu_custom_call.1']
    %12 = vsyncpa [#allocation3], 0
    // Predicated region
    $region2: #{tpu_custom_call.1} parent=1 // pred_check
      _
    $region3: #{tpu_custom_call.1} parent=1 // pred_check_branch
      %14 = sbr.rel (0) target = $region5
    $region4: #{tpu_custom_call.1} parent=1 // pred_region
      _
    $region5: #{tpu_custom_call.1} parent=1 // pred_fallthru
      _
    // Predicated region
    $region6: #{tpu_custom_call.1} parent=1 // pred_check
      _
    $region7: #{tpu_custom_call.1} parent=1 // pred_check_branch
      %16 = sbr.rel (0) target = $region9
    $region8: #{tpu_custom_call.1} parent=1 // pred_region
      _
    $region9: #{tpu_custom_call.1} parent=1 // pred_fallthru
      _
    // Predicated region
    $region10: #{tpu_custom_call.1} parent=1 // pred_check
      _
    $region11: #{tpu_custom_call.1} parent=1 // pred_check_branch
      %18 = sbr.rel (0) target = $region13
    $region12: #{tpu_custom_call.1} parent=1 // pred_region
      _
    $region13: #{tpu_custom_call.1} parent=1 // pred_fallthru
      _
    // Predicated region
    $region14: #{tpu_custom_call.1} parent=1 // pred_check
      _
    $region15: #{tpu_custom_call.1} parent=1 // pred_check_branch
      %20 = sbr.rel (0) target = $region17
    $region16: #{tpu_custom_call.1} parent=1 // pred_region
      _
    $region17: #{tpu_custom_call.1} parent=1 // pred_fallthru
      _
    // Predicated region
    $region18: #{tpu_custom_call.1} parent=1 // pred_check
      _
    $region19: #{tpu_custom_call.1} parent=1 // pred_check_branch
      %22 = sbr.rel (0) target = $region21
    $region20: #{tpu_custom_call.1} parent=1 // pred_region
      _
    $region21: #{tpu_custom_call.1} parent=1 // pred_fallthru
      _
    // Predicated region
    $region22: #{tpu_custom_call.1} parent=1 // pred_check
      _
    $region23: #{tpu_custom_call.1} parent=1 // pred_check_branch
      %24 = sbr.rel (0) target = $region25
    $region24: #{tpu_custom_call.1} parent=1 // pred_region
      _
    $region25: #{tpu_custom_call.1} parent=1 // pred_fallthru
      _
    // Predicated region
    $region26: #{tpu_custom_call.1} parent=1 // pred_check
      _
    $region27: #{tpu_custom_call.1} parent=1 // pred_check_branch
      %26 = sbr.rel (0) target = $region29
    $region28: #{tpu_custom_call.1} parent=1 // pred_region
      _
    $region29: #{tpu_custom_call.1} parent=1 // pred_fallthru
      _
    %v28 = vld [vmem:[%s0] sm:$0xff]
    %v29 = vld [vmem:[%s0 + $0x8] sm:$0xff]
    %v30 = vld [vmem:[%s0 + $0x10] sm:$0xff]
    %v31 = vld [vmem:[%s0 + $0x18] sm:$0xff]
    %v32 = vld [vmem:[%s0 + $0x20] sm:$0xff]
    %v33 = vld [vmem:[%s0 + $0x28] sm:$0xff]
    %v34 = vld [vmem:[%s0 + $0x30] sm:$0xff]
    %v35 = vld [vmem:[%s0 + $0x38] sm:$0xff]
    %v36 = vld [vmem:[%s0 + $0x40] sm:$0xff]
    %v37 = vld [vmem:[%s0 + $0x48] sm:$0xff]
    %v38 = vld [vmem:[%s0 + $0x50] sm:$0xff]
    %v39 = vld [vmem:[%s0 + $0x58] sm:$0xff]
    %v40 = vld [vmem:[%s0 + $0x60] sm:$0xff]
    %v41 = vld [vmem:[%s0 + $0x68] sm:$0xff]
    %v42 = vld [vmem:[%s0 + $0x70] sm:$0xff]
    %v43 = vld [vmem:[%s0 + $0x78] sm:$0xff]
    %v44 = vld [vmem:[%s0 + $0x80] sm:$0xff]
    %v45 = vld [vmem:[%s0 + $0x88] sm:$0xff]
    %v46 = vld [vmem:[%s0 + $0x90] sm:$0xff]
    %v47 = vld [vmem:[%s0 + $0x98] sm:$0xff]
    %v48 = vld [vmem:[%s0 + $0xa0] sm:$0xff]
    %v49 = vld [vmem:[%s0 + $0xa8] sm:$0xff]
    %v50 = vld [vmem:[%s0 + $0xb0] sm:$0xff]
    %v51 = vld [vmem:[%s0 + $0xb8] sm:$0xff]
    %v52 = vld [vmem:[%s0 + $0xc0] sm:$0xff]
    %v53 = vld [vmem:[%s0 + $0xc8] sm:$0xff]
    %v54 = vld [vmem:[%s0 + $0xd0] sm:$0xff]
    %v55 = vld [vmem:[%s0 + $0xd8] sm:$0xff]
    %v56 = vld [vmem:[%s0 + $0xe0] sm:$0xff]
    %v57 = vld [vmem:[%s0 + $0xe8] sm:$0xff]
    %v58 = vld [vmem:[%s0 + $0xf0] sm:$0xff]
    %v59 = vld [vmem:[%s0 + $0xf8] sm:$0xff]
    %v60 = vpack.c.bf16 %v29, %v28
    %v61 = vpack.c.bf16 %v31, %v30
    %v62 = vpack.c.bf16 %v33, %v32
    %v63 = vpack.c.bf16 %v35, %v34
    %v64 = vpack.c.bf16 %v37, %v36
    %v65 = vpack.c.bf16 %v39, %v38
    %v66 = vpack.c.bf16 %v41, %v40
    %v67 = vpack.c.bf16 %v43, %v42
    %v68 = vpack.c.bf16 %v45, %v44
    %v69 = vpack.c.bf16 %v47, %v46
    %v70 = vpack.c.bf16 %v49, %v48
    %v71 = vpack.c.bf16 %v51, %v50
    %v72 = vpack.c.bf16 %v53, %v52
    %v73 = vpack.c.bf16 %v55, %v54
    %v74 = vpack.c.bf16 %v57, %v56
    %v75 = vpack.c.bf16 %v59, %v58
    %v76 = vld [vmem:[%s1] sm:$0xf]
    %v77 = vld [vmem:[%s1 + $0x4] sm:$0xf]
    %v78 = vld [vmem:[%s1 + $0x8] sm:$0xf]
    %v79 = vld [vmem:[%s1 + $0xc] sm:$0xf]
    %v80 = vld [vmem:[%s2] sm:$0x1]
    %v82 = vlaneseq
    %v83 = vshrl.u32 %v82, 7
    %v84 = vsub.s32 0, %v83
    %v85 = vrot.slane %v80, %v84
    %v91 = vunpack.c.l.b16 %v76
    %v92 = vunpack.c.l.b16 %v77
    %v93 = vunpack.c.l.b16 %v78
    %v94 = vunpack.c.l.b16 %v79
    %v95 = vpack.c.b16 %v92, %v91
    %v96 = vpack.c.b16 %v94, %v93
    %vm99 = vcmask 261120
    %v101 = vsel %vm99, %v60, 0
    %v104 = vsel %vm99, %v61, 0
    %v107 = vsel %vm99, %v62, 0
    %v110 = vsel %vm99, %v63, 0
    %v113 = vsel %vm99, %v64, 0
    %v116 = vsel %vm99, %v65, 0
    %v119 = vsel %vm99, %v66, 0
    %v122 = vsel %vm99, %v67, 0
    %v125 = vsel %vm99, %v68, 0
    %v128 = vsel %vm99, %v69, 0
    %v131 = vsel %vm99, %v70, 0
    %v134 = vsel %vm99, %v71, 0
    %v137 = vsel %vm99, %v72, 0
    %v140 = vsel %vm99, %v73, 0
    %v143 = vsel %vm99, %v74, 0
    %v146 = vsel %vm99, %v75, 0
    %148 = vmatprep.subr.bf16.mxu0 0
    %149 = vmatpush1.bf16.msra.mxu0 0
    %150 = vmatprep.subr.bf16.mxu0 0
    %151 = vmatpush1.bf16.msra.mxu0 0
    %152 = vmatprep.subr.bf16.mxu0 0
    %153 = vmatpush1.bf16.msra.mxu0 0
    %154 = vmatprep.subr.bf16.mxu0 0
    %155 = vmatpush1.bf16.msra.mxu0 0
    %156 = vmatprep.subr.bf16.mxu0 0
    %157 = vmatpush1.bf16.msra.mxu0 0
    %158 = vmatprep.subr.bf16.mxu0 0
    %159 = vmatpush1.bf16.msra.mxu0 0
    %160 = vmatprep.subr.bf16.mxu0 0
    %161 = vmatpush1.bf16.msra.mxu0 %v96
    %162 = vmatprep.subr.bf16.mxu0 0
    %163 = vmatpush1.bf16.msra.mxu0 %v95
    %164 = vmatprep.subr.bf16.mxu0 0
    %165 = vmatpush2.bf16.msra.mxu0 0
    %166 = vmatprep.subr.bf16.mxu0 0
    %167 = vmatpush2.bf16.msra.mxu0 0
    %168 = vmatprep.subr.bf16.mxu0 0
    %169 = vmatpush2.bf16.msra.mxu0 0
    %170 = vmatprep.subr.bf16.mxu0 0
    %171 = vmatpush2.bf16.msra.mxu0 0
    %172 = vmatprep.subr.bf16.mxu0 0
    %173 = vmatpush2.bf16.msra.mxu0 0
    %174 = vmatprep.subr.bf16.mxu0 0
    %175 = vmatpush2.bf16.msra.mxu0 0
    %176 = vmatprep.subr.bf16.mxu0 0
    %177 = vmatpush2.bf16.msra.mxu0 0
    %178 = vmatprep.subr.bf16.mxu0 0
    %179 = vmatpush2.bf16.msra.mxu0 0
    %180 = vmatprep.mubr.bf16.mxu0 0
    %181 = vmatmul.mubr.bf16.gmra.mxu0 %v101
    %v182 = vpop.f32.mrf.mxu0
    %v183 = vadd.f32 %v85, %v182
    %v184 = vpop.f32.mrf.mxu0
    %v185 = vpop.f32.mrf.mxu0
    %v186 = vadd.f32 %v85, %v185
    %v187 = vpop.f32.mrf.mxu0
    %188 = vmatprep.mubr.bf16.mxu0 0
    %189 = vmatmul.mubr.bf16.gmra.mxu0 %v104
    %v190 = vpop.f32.mrf.mxu0
    %v191 = vadd.f32 %v85, %v190
    %v192 = vpop.f32.mrf.mxu0
    %v193 = vpop.f32.mrf.mxu0
    %v194 = vadd.f32 %v85, %v193
    %v195 = vpop.f32.mrf.mxu0
    %196 = vmatprep.mubr.bf16.mxu0 0
    %197 = vmatmul.mubr.bf16.gmra.mxu0 %v107
    %v198 = vpop.f32.mrf.mxu0
    %v199 = vadd.f32 %v85, %v198
    %v200 = vpop.f32.mrf.mxu0
    %v201 = vpop.f32.mrf.mxu0
    %v202 = vadd.f32 %v85, %v201
    %v203 = vpop.f32.mrf.mxu0
    %204 = vmatprep.mubr.bf16.mxu0 0
    %205 = vmatmul.mubr.bf16.gmra.mxu0 %v110
    %v206 = vpop.f32.mrf.mxu0
    %v207 = vadd.f32 %v85, %v206
    %v208 = vpop.f32.mrf.mxu0
    %v209 = vpop.f32.mrf.mxu0
    %v210 = vadd.f32 %v85, %v209
    %v211 = vpop.f32.mrf.mxu0
    %212 = vmatprep.mubr.bf16.mxu0 0
    %213 = vmatmul.mubr.bf16.gmra.mxu0 %v113
    %v214 = vpop.f32.mrf.mxu0
    %v215 = vadd.f32 %v85, %v214
    %v216 = vpop.f32.mrf.mxu0
    %v217 = vpop.f32.mrf.mxu0
    %v218 = vadd.f32 %v85, %v217
    %v219 = vpop.f32.mrf.mxu0
    %220 = vmatprep.mubr.bf16.mxu0 0
    %221 = vmatmul.mubr.bf16.gmra.mxu0 %v116
    %v222 = vpop.f32.mrf.mxu0
    %v223 = vadd.f32 %v85, %v222
    %v224 = vpop.f32.mrf.mxu0
    %v225 = vpop.f32.mrf.mxu0
    %v226 = vadd.f32 %v85, %v225
    %v227 = vpop.f32.mrf.mxu0
    %228 = vmatprep.mubr.bf16.mxu0 0
    %229 = vmatmul.mubr.bf16.gmra.mxu0 %v119
    %v230 = vpop.f32.mrf.mxu0
    %v231 = vadd.f32 %v85, %v230
    %v232 = vpop.f32.mrf.mxu0
    %v233 = vpop.f32.mrf.mxu0
    %v234 = vadd.f32 %v85, %v233
    %v235 = vpop.f32.mrf.mxu0
    %236 = vmatprep.mubr.bf16.mxu0 0
    %237 = vmatmul.mubr.bf16.gmra.mxu0 %v122
    %v238 = vpop.f32.mrf.mxu0
    %v239 = vadd.f32 %v85, %v238
    %v240 = vpop.f32.mrf.mxu0
    %v241 = vpop.f32.mrf.mxu0
    %v242 = vadd.f32 %v85, %v241
    %v243 = vpop.f32.mrf.mxu0
    %244 = vmatprep.mubr.bf16.mxu0 0
    %245 = vmatmul.mubr.bf16.gmra.mxu0 %v125
    %v246 = vpop.f32.mrf.mxu0
    %v247 = vadd.f32 %v85, %v246
    %v248 = vpop.f32.mrf.mxu0
    %v249 = vpop.f32.mrf.mxu0
    %v250 = vadd.f32 %v85, %v249
    %v251 = vpop.f32.mrf.mxu0
    %252 = vmatprep.mubr.bf16.mxu0 0
    %253 = vmatmul.mubr.bf16.gmra.mxu0 %v128
    %v254 = vpop.f32.mrf.mxu0
    %v255 = vadd.f32 %v85, %v254
    %v256 = vpop.f32.mrf.mxu0
    %v257 = vpop.f32.mrf.mxu0
    %v258 = vadd.f32 %v85, %v257
    %v259 = vpop.f32.mrf.mxu0
    %260 = vmatprep.mubr.bf16.mxu0 0
    %261 = vmatmul.mubr.bf16.gmra.mxu0 %v131
    %v262 = vpop.f32.mrf.mxu0
    %v263 = vadd.f32 %v85, %v262
    %v264 = vpop.f32.mrf.mxu0
    %v265 = vpop.f32.mrf.mxu0
    %v266 = vadd.f32 %v85, %v265
    %v267 = vpop.f32.mrf.mxu0
    %268 = vmatprep.mubr.bf16.mxu0 0
    %269 = vmatmul.mubr.bf16.gmra.mxu0 %v134
    %v270 = vpop.f32.mrf.mxu0
    %v271 = vadd.f32 %v85, %v270
    %v272 = vpop.f32.mrf.mxu0
    %v273 = vpop.f32.mrf.mxu0
    %v274 = vadd.f32 %v85, %v273
    %v275 = vpop.f32.mrf.mxu0
    %276 = vmatprep.mubr.bf16.mxu0 0
    %277 = vmatmul.mubr.bf16.gmra.mxu0 %v137
    %v278 = vpop.f32.mrf.mxu0
    %v279 = vadd.f32 %v85, %v278
    %v280 = vpop.f32.mrf.mxu0
    %v281 = vpop.f32.mrf.mxu0
    %v282 = vadd.f32 %v85, %v281
    %v283 = vpop.f32.mrf.mxu0
    %284 = vmatprep.mubr.bf16.mxu0 0
    %285 = vmatmul.mubr.bf16.gmra.mxu0 %v140
    %v286 = vpop.f32.mrf.mxu0
    %v287 = vadd.f32 %v85, %v286
    %v288 = vpop.f32.mrf.mxu0
    %v289 = vpop.f32.mrf.mxu0
    %v290 = vadd.f32 %v85, %v289
    %v291 = vpop.f32.mrf.mxu0
    %292 = vmatprep.mubr.bf16.mxu0 0
    %293 = vmatmul.mubr.bf16.gmra.mxu0 %v143
    %v294 = vpop.f32.mrf.mxu0
    %v295 = vadd.f32 %v85, %v294
    %v296 = vpop.f32.mrf.mxu0
    %v297 = vpop.f32.mrf.mxu0
    %v298 = vadd.f32 %v85, %v297
    %v299 = vpop.f32.mrf.mxu0
    %300 = vmatprep.mubr.bf16.mxu0 0
    %301 = vmatmul.mubr.bf16.gmra.mxu0 %v146
    %v302 = vpop.f32.mrf.mxu0
    %v303 = vadd.f32 %v85, %v302
    %v304 = vpop.f32.mrf.mxu0
    %v305 = vpop.f32.mrf.mxu0
    %v306 = vadd.f32 %v85, %v305
    %v307 = vpop.f32.mrf.mxu0
    %308 = vdwg.mxu0
    %v309 = vmul.f32 %v183, 0.2
    %v310 = vmul.f32 %v186, 0.2
    %v311 = vmul.f32 %v191, 0.2
    %v312 = vmul.f32 %v194, 0.2
    %v313 = vmul.f32 %v199, 0.2
    %v314 = vmul.f32 %v202, 0.2
    %v315 = vmul.f32 %v207, 0.2
    %v316 = vmul.f32 %v210, 0.2
    %v317 = vmul.f32 %v215, 0.2
    %v318 = vmul.f32 %v218, 0.2
    %v319 = vmul.f32 %v223, 0.2
    %v320 = vmul.f32 %v226, 0.2
    %v321 = vmul.f32 %v231, 0.2
    %v322 = vmul.f32 %v234, 0.2
    %v323 = vmul.f32 %v239, 0.2
    %v324 = vmul.f32 %v242, 0.2
    %v325 = vmul.f32 %v247, 0.2
    %v326 = vmul.f32 %v250, 0.2
    %v327 = vmul.f32 %v255, 0.2
    %v328 = vmul.f32 %v258, 0.2
    %v329 = vmul.f32 %v263, 0.2
    %v330 = vmul.f32 %v266, 0.2
    %v331 = vmul.f32 %v271, 0.2
    %v332 = vmul.f32 %v274, 0.2
    %v333 = vmul.f32 %v279, 0.2
    %v334 = vmul.f32 %v282, 0.2
    %v335 = vmul.f32 %v287, 0.2
    %v336 = vmul.f32 %v290, 0.2
    %v337 = vmul.f32 %v295, 0.2
    %v338 = vmul.f32 %v298, 0.2
    %v339 = vmul.f32 %v303, 0.2
    %v340 = vmul.f32 %v306, 0.2
    %v341 = vmax.f32 %v183, %v309
    %v342 = vmax.f32 %v186, %v310
    %v343 = vmax.f32 %v191, %v311
    %v344 = vmax.f32 %v194, %v312
    %v345 = vmax.f32 %v199, %v313
    %v346 = vmax.f32 %v202, %v314
    %v347 = vmax.f32 %v207, %v315
    %v348 = vmax.f32 %v210, %v316
    %v349 = vmax.f32 %v215, %v317
    %v350 = vmax.f32 %v218, %v318
    %v351 = vmax.f32 %v223, %v319
    %v352 = vmax.f32 %v226, %v320
    %v353 = vmax.f32 %v231, %v321
    %v354 = vmax.f32 %v234, %v322
    %v355 = vmax.f32 %v239, %v323
    %v356 = vmax.f32 %v242, %v324
    %v357 = vmax.f32 %v247, %v325
    %v358 = vmax.f32 %v250, %v326
    %v359 = vmax.f32 %v255, %v327
    %v360 = vmax.f32 %v258, %v328
    %v361 = vmax.f32 %v263, %v329
    %v362 = vmax.f32 %v266, %v330
    %v363 = vmax.f32 %v271, %v331
    %v364 = vmax.f32 %v274, %v332
    %v365 = vmax.f32 %v279, %v333
    %v366 = vmax.f32 %v282, %v334
    %v367 = vmax.f32 %v287, %v335
    %v368 = vmax.f32 %v290, %v336
    %v369 = vmax.f32 %v295, %v337
    %v370 = vmax.f32 %v298, %v338
    %v371 = vmax.f32 %v303, %v339
    %v372 = vmax.f32 %v306, %v340
    %v373 = vpack.c.bf16 %v342, %v341
    %v374 = vpack.c.bf16 %v344, %v343
    %v375 = vpack.c.bf16 %v346, %v345
    %v376 = vpack.c.bf16 %v348, %v347
    %v377 = vpack.c.bf16 %v350, %v349
    %v378 = vpack.c.bf16 %v352, %v351
    %v379 = vpack.c.bf16 %v354, %v353
    %v380 = vpack.c.bf16 %v356, %v355
    %v381 = vpack.c.bf16 %v358, %v357
    %v382 = vpack.c.bf16 %v360, %v359
    %v383 = vpack.c.bf16 %v362, %v361
    %v384 = vpack.c.bf16 %v364, %v363
    %v385 = vpack.c.bf16 %v366, %v365
    %v386 = vpack.c.bf16 %v368, %v367
    %v387 = vpack.c.bf16 %v370, %v369
    %v388 = vpack.c.bf16 %v372, %v371
    %v389 = vld [vmem:[%s3] sm:$0xf]
    %v390 = vld [vmem:[%s3 + $0x4] sm:$0xf]
    %v391 = vld [vmem:[%s3 + $0x8] sm:$0xf]
    %v392 = vld [vmem:[%s3 + $0xc] sm:$0xf]
    %v393 = vld [vmem:[%s3 + $0x10] sm:$0xf]
    %v394 = vld [vmem:[%s3 + $0x14] sm:$0xf]
    %v395 = vld [vmem:[%s3 + $0x18] sm:$0xf]
    %v396 = vld [vmem:[%s3 + $0x1c] sm:$0xf]
    %v397 = vld [vmem:[%s3 + $0x20] sm:$0xf]
    %v398 = vld [vmem:[%s3 + $0x24] sm:$0xf]
    %v399 = vld [vmem:[%s3 + $0x28] sm:$0xf]
    %v400 = vld [vmem:[%s3 + $0x2c] sm:$0xf]
    %v401 = vld [vmem:[%s3 + $0x30] sm:$0xf]
    %v402 = vld [vmem:[%s3 + $0x34] sm:$0xf]
    %v403 = vld [vmem:[%s3 + $0x38] sm:$0xf]
    %v404 = vld [vmem:[%s3 + $0x3c] sm:$0xf]
    %v405 = vld [vmem:[%s4] sm:$0x1]
    %v407 = vlaneseq
    %v408 = vshrl.u32 %v407, 7
    %v409 = vsub.s32 0, %v408
    %v410 = vrot.slane %v405, %v409
    %v428 = vunpack.c.l.b16 %v389
    %v429 = vunpack.c.l.b16 %v390
    %v430 = vunpack.c.l.b16 %v391
    %v431 = vunpack.c.l.b16 %v392
    %v432 = vunpack.c.l.b16 %v393
    %v433 = vunpack.c.l.b16 %v394
    %v434 = vunpack.c.l.b16 %v395
    %v435 = vunpack.c.l.b16 %v396
    %v436 = vunpack.c.l.b16 %v397
    %v437 = vunpack.c.l.b16 %v398
    %v438 = vunpack.c.l.b16 %v399
    %v439 = vunpack.c.l.b16 %v400
    %v440 = vunpack.c.l.b16 %v401
    %v441 = vunpack.c.l.b16 %v402
    %v442 = vunpack.c.l.b16 %v403
    %v443 = vunpack.c.l.b16 %v404
    %v444 = vpack.c.b16 %v429, %v428
    %v445 = vpack.c.b16 %v431, %v430
    %v446 = vpack.c.b16 %v433, %v432
    %v447 = vpack.c.b16 %v435, %v434
    %v448 = vpack.c.b16 %v437, %v436
    %v449 = vpack.c.b16 %v439, %v438
    %v450 = vpack.c.b16 %v441, %v440
    %v451 = vpack.c.b16 %v443, %v442
    %460 = vmatprep.subr.bf16.mxu0 0
    %461 = vmatpush1.bf16.msra.mxu0 %v451
    %462 = vmatprep.subr.bf16.mxu0 0
    %463 = vmatpush1.bf16.msra.mxu0 %v450
    %464 = vmatprep.subr.bf16.mxu0 0
    %465 = vmatpush1.bf16.msra.mxu0 %v449
    %466 = vmatprep.subr.bf16.mxu0 0
    %467 = vmatpush1.bf16.msra.mxu0 %v448
    %468 = vmatprep.subr.bf16.mxu0 0
    %469 = vmatpush1.bf16.msra.mxu0 %v447
    %470 = vmatprep.subr.bf16.mxu0 0
    %471 = vmatpush1.bf16.msra.mxu0 %v446
    %472 = vmatprep.subr.bf16.mxu0 0
    %473 = vmatpush1.bf16.msra.mxu0 %v445
    %474 = vmatprep.subr.bf16.mxu0 0
    %475 = vmatpush1.bf16.msra.mxu0 %v444
    %476 = vmatprep.subr.bf16.mxu0 0
    %477 = vmatpush2.bf16.msra.mxu0 0
    %478 = vmatprep.subr.bf16.mxu0 0
    %479 = vmatpush2.bf16.msra.mxu0 0
    %480 = vmatprep.subr.bf16.mxu0 0
    %481 = vmatpush2.bf16.msra.mxu0 0
    %482 = vmatprep.subr.bf16.mxu0 0
    %483 = vmatpush2.bf16.msra.mxu0 0
    %484 = vmatprep.subr.bf16.mxu0 0
    %485 = vmatpush2.bf16.msra.mxu0 0
    %486 = vmatprep.subr.bf16.mxu0 0
    %487 = vmatpush2.bf16.msra.mxu0 0
    %488 = vmatprep.subr.bf16.mxu0 0
    %489 = vmatpush2.bf16.msra.mxu0 0
    %490 = vmatprep.subr.bf16.mxu0 0
    %491 = vmatpush2.bf16.msra.mxu0 0
    %492 = vmatprep.mubr.bf16.mxu0 0
    %493 = vmatmul.mubr.bf16.gmra.mxu0 %v373
    %v494 = vpop.f32.mrf.mxu0
    %v495 = vadd.f32 %v410, %v494
    %v496 = vpop.f32.mrf.mxu0
    %v497 = vpop.f32.mrf.mxu0
    %v498 = vadd.f32 %v410, %v497
    %v499 = vpop.f32.mrf.mxu0
    %500 = vmatprep.mubr.bf16.mxu0 0
    %501 = vmatmul.mubr.bf16.gmra.mxu0 %v374
    %v502 = vpop.f32.mrf.mxu0
    %v503 = vadd.f32 %v410, %v502
    %v504 = vpop.f32.mrf.mxu0
    %v505 = vpop.f32.mrf.mxu0
    %v506 = vadd.f32 %v410, %v505
    %v507 = vpop.f32.mrf.mxu0
    %508 = vmatprep.mubr.bf16.mxu0 0
    %509 = vmatmul.mubr.bf16.gmra.mxu0 %v375
    %v510 = vpop.f32.mrf.mxu0
    %v511 = vadd.f32 %v410, %v510
    %v512 = vpop.f32.mrf.mxu0
    %v513 = vpop.f32.mrf.mxu0
    %v514 = vadd.f32 %v410, %v513
    %v515 = vpop.f32.mrf.mxu0
    %516 = vmatprep.mubr.bf16.mxu0 0
    %517 = vmatmul.mubr.bf16.gmra.mxu0 %v376
    %v518 = vpop.f32.mrf.mxu0
    %v519 = vadd.f32 %v410, %v518
    %v520 = vpop.f32.mrf.mxu0
    %v521 = vpop.f32.mrf.mxu0
    %v522 = vadd.f32 %v410, %v521
    %v523 = vpop.f32.mrf.mxu0
    %524 = vmatprep.mubr.bf16.mxu0 0
    %525 = vmatmul.mubr.bf16.gmra.mxu0 %v377
    %v526 = vpop.f32.mrf.mxu0
    %v527 = vadd.f32 %v410, %v526
    %v528 = vpop.f32.mrf.mxu0
    %v529 = vpop.f32.mrf.mxu0
    %v530 = vadd.f32 %v410, %v529
    %v531 = vpop.f32.mrf.mxu0
    %532 = vmatprep.mubr.bf16.mxu0 0
    %533 = vmatmul.mubr.bf16.gmra.mxu0 %v378
    %v534 = vpop.f32.mrf.mxu0
    %v535 = vadd.f32 %v410, %v534
    %v536 = vpop.f32.mrf.mxu0
    %v537 = vpop.f32.mrf.mxu0
    %v538 = vadd.f32 %v410, %v537
    %v539 = vpop.f32.mrf.mxu0
    %540 = vmatprep.mubr.bf16.mxu0 0
    %541 = vmatmul.mubr.bf16.gmra.mxu0 %v379
    %v542 = vpop.f32.mrf.mxu0
    %v543 = vadd.f32 %v410, %v542
    %v544 = vpop.f32.mrf.mxu0
    %v545 = vpop.f32.mrf.mxu0
    %v546 = vadd.f32 %v410, %v545
    %v547 = vpop.f32.mrf.mxu0
    %548 = vmatprep.mubr.bf16.mxu0 0
    %549 = vmatmul.mubr.bf16.gmra.mxu0 %v380
    %v550 = vpop.f32.mrf.mxu0
    %v551 = vadd.f32 %v410, %v550
    %v552 = vpop.f32.mrf.mxu0
    %v553 = vpop.f32.mrf.mxu0
    %v554 = vadd.f32 %v410, %v553
    %v555 = vpop.f32.mrf.mxu0
    %556 = vmatprep.mubr.bf16.mxu0 0
    %557 = vmatmul.mubr.bf16.gmra.mxu0 %v381
    %v558 = vpop.f32.mrf.mxu0
    %v559 = vadd.f32 %v410, %v558
    %v560 = vpop.f32.mrf.mxu0
    %v561 = vpop.f32.mrf.mxu0
    %v562 = vadd.f32 %v410, %v561
    %v563 = vpop.f32.mrf.mxu0
    %564 = vmatprep.mubr.bf16.mxu0 0
    %565 = vmatmul.mubr.bf16.gmra.mxu0 %v382
    %v566 = vpop.f32.mrf.mxu0
    %v567 = vadd.f32 %v410, %v566
    %v568 = vpop.f32.mrf.mxu0
    %v569 = vpop.f32.mrf.mxu0
    %v570 = vadd.f32 %v410, %v569
    %v571 = vpop.f32.mrf.mxu0
    %572 = vmatprep.mubr.bf16.mxu0 0
    %573 = vmatmul.mubr.bf16.gmra.mxu0 %v383
    %v574 = vpop.f32.mrf.mxu0
    %v575 = vadd.f32 %v410, %v574
    %v576 = vpop.f32.mrf.mxu0
    %v577 = vpop.f32.mrf.mxu0
    %v578 = vadd.f32 %v410, %v577
    %v579 = vpop.f32.mrf.mxu0
    %580 = vmatprep.mubr.bf16.mxu0 0
    %581 = vmatmul.mubr.bf16.gmra.mxu0 %v384
    %v582 = vpop.f32.mrf.mxu0
    %v583 = vadd.f32 %v410, %v582
    %v584 = vpop.f32.mrf.mxu0
    %v585 = vpop.f32.mrf.mxu0
    %v586 = vadd.f32 %v410, %v585
    %v587 = vpop.f32.mrf.mxu0
    %588 = vmatprep.mubr.bf16.mxu0 0
    %589 = vmatmul.mubr.bf16.gmra.mxu0 %v385
    %v590 = vpop.f32.mrf.mxu0
    %v591 = vadd.f32 %v410, %v590
    %v592 = vpop.f32.mrf.mxu0
    %v593 = vpop.f32.mrf.mxu0
    %v594 = vadd.f32 %v410, %v593
    %v595 = vpop.f32.mrf.mxu0
    %596 = vmatprep.mubr.bf16.mxu0 0
    %597 = vmatmul.mubr.bf16.gmra.mxu0 %v386
    %v598 = vpop.f32.mrf.mxu0
    %v599 = vadd.f32 %v410, %v598
    %v600 = vpop.f32.mrf.mxu0
    %v601 = vpop.f32.mrf.mxu0
    %v602 = vadd.f32 %v410, %v601
    %v603 = vpop.f32.mrf.mxu0
    %604 = vmatprep.mubr.bf16.mxu0 0
    %605 = vmatmul.mubr.bf16.gmra.mxu0 %v387
    %v606 = vpop.f32.mrf.mxu0
    %v607 = vadd.f32 %v410, %v606
    %v608 = vpop.f32.mrf.mxu0
    %v609 = vpop.f32.mrf.mxu0
    %v610 = vadd.f32 %v410, %v609
    %v611 = vpop.f32.mrf.mxu0
    %612 = vmatprep.mubr.bf16.mxu0 0
    %613 = vmatmul.mubr.bf16.gmra.mxu0 %v388
    %v614 = vpop.f32.mrf.mxu0
    %v615 = vadd.f32 %v410, %v614
    %v616 = vpop.f32.mrf.mxu0
    %v617 = vpop.f32.mrf.mxu0
    %v618 = vadd.f32 %v410, %v617
    %v619 = vpop.f32.mrf.mxu0
    %620 = vdwg.mxu0
    %v621 = vmul.f32 %v495, 0.2
    %v622 = vmul.f32 %v498, 0.2
    %v623 = vmul.f32 %v503, 0.2
    %v624 = vmul.f32 %v506, 0.2
    %v625 = vmul.f32 %v511, 0.2
    %v626 = vmul.f32 %v514, 0.2
    %v627 = vmul.f32 %v519, 0.2
    %v628 = vmul.f32 %v522, 0.2
    %v629 = vmul.f32 %v527, 0.2
    %v630 = vmul.f32 %v530, 0.2
    %v631 = vmul.f32 %v535, 0.2
    %v632 = vmul.f32 %v538, 0.2
    %v633 = vmul.f32 %v543, 0.2
    %v634 = vmul.f32 %v546, 0.2
    %v635 = vmul.f32 %v551, 0.2
    %v636 = vmul.f32 %v554, 0.2
    %v637 = vmul.f32 %v559, 0.2
    %v638 = vmul.f32 %v562, 0.2
    %v639 = vmul.f32 %v567, 0.2
    %v640 = vmul.f32 %v570, 0.2
    %v641 = vmul.f32 %v575, 0.2
    %v642 = vmul.f32 %v578, 0.2
    %v643 = vmul.f32 %v583, 0.2
    %v644 = vmul.f32 %v586, 0.2
    %v645 = vmul.f32 %v591, 0.2
    %v646 = vmul.f32 %v594, 0.2
    %v647 = vmul.f32 %v599, 0.2
    %v648 = vmul.f32 %v602, 0.2
    %v649 = vmul.f32 %v607, 0.2
    %v650 = vmul.f32 %v610, 0.2
    %v651 = vmul.f32 %v615, 0.2
    %v652 = vmul.f32 %v618, 0.2
    %v653 = vmax.f32 %v495, %v621
    %v654 = vmax.f32 %v498, %v622
    %v655 = vmax.f32 %v503, %v623
    %v656 = vmax.f32 %v506, %v624
    %v657 = vmax.f32 %v511, %v625
    %v658 = vmax.f32 %v514, %v626
    %v659 = vmax.f32 %v519, %v627
    %v660 = vmax.f32 %v522, %v628
    %v661 = vmax.f32 %v527, %v629
    %v662 = vmax.f32 %v530, %v630
    %v663 = vmax.f32 %v535, %v631
    %v664 = vmax.f32 %v538, %v632
    %v665 = vmax.f32 %v543, %v633
    %v666 = vmax.f32 %v546, %v634
    %v667 = vmax.f32 %v551, %v635
    %v668 = vmax.f32 %v554, %v636
    %v669 = vmax.f32 %v559, %v637
    %v670 = vmax.f32 %v562, %v638
    %v671 = vmax.f32 %v567, %v639
    %v672 = vmax.f32 %v570, %v640
    %v673 = vmax.f32 %v575, %v641
    %v674 = vmax.f32 %v578, %v642
    %v675 = vmax.f32 %v583, %v643
    %v676 = vmax.f32 %v586, %v644
    %v677 = vmax.f32 %v591, %v645
    %v678 = vmax.f32 %v594, %v646
    %v679 = vmax.f32 %v599, %v647
    %v680 = vmax.f32 %v602, %v648
    %v681 = vmax.f32 %v607, %v649
    %v682 = vmax.f32 %v610, %v650
    %v683 = vmax.f32 %v615, %v651
    %v684 = vmax.f32 %v618, %v652
    %v685 = vpack.c.bf16 %v654, %v653
    %v686 = vpack.c.bf16 %v656, %v655
    %v687 = vpack.c.bf16 %v658, %v657
    %v688 = vpack.c.bf16 %v660, %v659
    %v689 = vpack.c.bf16 %v662, %v661
    %v690 = vpack.c.bf16 %v664, %v663
    %v691 = vpack.c.bf16 %v666, %v665
    %v692 = vpack.c.bf16 %v668, %v667
    %v693 = vpack.c.bf16 %v670, %v669
    %v694 = vpack.c.bf16 %v672, %v671
    %v695 = vpack.c.bf16 %v674, %v673
    %v696 = vpack.c.bf16 %v676, %v675
    %v697 = vpack.c.bf16 %v678, %v677
    %v698 = vpack.c.bf16 %v680, %v679
    %v699 = vpack.c.bf16 %v682, %v681
    %v700 = vpack.c.bf16 %v684, %v683
    %v701 = vld [vmem:[%s5] sm:$0xff]
    %v702 = vld [vmem:[%s5 + $0x8] sm:$0xff]
    %v703 = vld [vmem:[%s5 + $0x10] sm:$0xff]
    %v704 = vld [vmem:[%s5 + $0x18] sm:$0xff]
    %v705 = vld [vmem:[%s5 + $0x20] sm:$0xff]
    %v706 = vld [vmem:[%s5 + $0x28] sm:$0xff]
    %v707 = vld [vmem:[%s5 + $0x30] sm:$0xff]
    %v708 = vld [vmem:[%s5 + $0x38] sm:$0xff]
    %v709 = vld [vmem:[%s5 + $0x40] sm:$0xff]
    %v710 = vld [vmem:[%s5 + $0x48] sm:$0xff]
    %v711 = vld [vmem:[%s5 + $0x50] sm:$0xff]
    %v712 = vld [vmem:[%s5 + $0x58] sm:$0xff]
    %v713 = vld [vmem:[%s5 + $0x60] sm:$0xff]
    %v714 = vld [vmem:[%s5 + $0x68] sm:$0xff]
    %v715 = vld [vmem:[%s5 + $0x70] sm:$0xff]
    %v716 = vld [vmem:[%s5 + $0x78] sm:$0xff]
    %v717 = vld [vmem:[%s6] sm:$0x3]
    %v719 = vlaneseq
    %v720 = vshrl.u32 %v719, 7
    %v721 = vsub.s32 0, %v720
    %v722 = vrot.slane %v717, %v721
    %v723 = vlaneseq
    %v724 = vshrl.u32 %v723, 7
    %v725 = vsub.s32 1, %v724
    %v726 = vrot.slane %v717, %v725
    %v745 = vunpack.c.l.b16 %v701
    %v746 = vunpack.c.h.b16 %v701
    %v747 = vunpack.c.l.b16 %v702
    %v748 = vunpack.c.h.b16 %v702
    %v749 = vunpack.c.l.b16 %v703
    %v750 = vunpack.c.h.b16 %v703
    %v751 = vunpack.c.l.b16 %v704
    %v752 = vunpack.c.h.b16 %v704
    %v753 = vunpack.c.l.b16 %v705
    %v754 = vunpack.c.h.b16 %v705
    %v755 = vunpack.c.l.b16 %v706
    %v756 = vunpack.c.h.b16 %v706
    %v757 = vunpack.c.l.b16 %v707
    %v758 = vunpack.c.h.b16 %v707
    %v759 = vunpack.c.l.b16 %v708
    %v760 = vunpack.c.h.b16 %v708
    %v761 = vunpack.c.l.b16 %v709
    %v762 = vunpack.c.h.b16 %v709
    %v763 = vunpack.c.l.b16 %v710
    %v764 = vunpack.c.h.b16 %v710
    %v765 = vunpack.c.l.b16 %v711
    %v766 = vunpack.c.h.b16 %v711
    %v767 = vunpack.c.l.b16 %v712
    %v768 = vunpack.c.h.b16 %v712
    %v769 = vunpack.c.l.b16 %v713
    %v770 = vunpack.c.h.b16 %v713
    %v771 = vunpack.c.l.b16 %v714
    %v772 = vunpack.c.h.b16 %v714
    %v773 = vunpack.c.l.b16 %v715
    %v774 = vunpack.c.h.b16 %v715
    %v775 = vunpack.c.l.b16 %v716
    %v776 = vunpack.c.h.b16 %v716
    %v777 = vpack.c.b16 %v747, %v745
    %v778 = vpack.c.b16 %v748, %v746
    %v779 = vpack.c.b16 %v751, %v749
    %v780 = vpack.c.b16 %v752, %v750
    %v781 = vpack.c.b16 %v755, %v753
    %v782 = vpack.c.b16 %v756, %v754
    %v783 = vpack.c.b16 %v759, %v757
    %v784 = vpack.c.b16 %v760, %v758
    %v785 = vpack.c.b16 %v763, %v761
    %v786 = vpack.c.b16 %v764, %v762
    %v787 = vpack.c.b16 %v767, %v765
    %v788 = vpack.c.b16 %v768, %v766
    %v789 = vpack.c.b16 %v771, %v769
    %v790 = vpack.c.b16 %v772, %v770
    %v791 = vpack.c.b16 %v775, %v773
    %v792 = vpack.c.b16 %v776, %v774
    %809 = vmatprep.subr.bf16.mxu0 %v792
    %810 = vmatpush1.bf16.msra.mxu0 %v791
    %811 = vmatprep.subr.bf16.mxu0 %v790
    %812 = vmatpush1.bf16.msra.mxu0 %v789
    %813 = vmatprep.subr.bf16.mxu0 %v788
    %814 = vmatpush1.bf16.msra.mxu0 %v787
    %815 = vmatprep.subr.bf16.mxu0 %v786
    %816 = vmatpush1.bf16.msra.mxu0 %v785
    %817 = vmatprep.subr.bf16.mxu0 %v784
    %818 = vmatpush1.bf16.msra.mxu0 %v783
    %819 = vmatprep.subr.bf16.mxu0 %v782
    %820 = vmatpush1.bf16.msra.mxu0 %v781
    %821 = vmatprep.subr.bf16.mxu0 %v780
    %822 = vmatpush1.bf16.msra.mxu0 %v779
    %823 = vmatprep.subr.bf16.mxu0 %v778
    %824 = vmatpush1.bf16.msra.mxu0 %v777
    %825 = vmatprep.subr.bf16.mxu0 0
    %826 = vmatpush2.bf16.msra.mxu0 0
    %827 = vmatprep.subr.bf16.mxu0 0
    %828 = vmatpush2.bf16.msra.mxu0 0
    %829 = vmatprep.subr.bf16.mxu0 0
    %830 = vmatpush2.bf16.msra.mxu0 0
    %831 = vmatprep.subr.bf16.mxu0 0
    %832 = vmatpush2.bf16.msra.mxu0 0
    %833 = vmatprep.subr.bf16.mxu0 0
    %834 = vmatpush2.bf16.msra.mxu0 0
    %835 = vmatprep.subr.bf16.mxu0 0
    %836 = vmatpush2.bf16.msra.mxu0 0
    %837 = vmatprep.subr.bf16.mxu0 0
    %838 = vmatpush2.bf16.msra.mxu0 0
    %839 = vmatprep.subr.bf16.mxu0 0
    %840 = vmatpush2.bf16.msra.mxu0 0
    %841 = vmatprep.mubr.bf16.mxu0 0
    %842 = vmatmul.mubr.bf16.gmra.mxu0 %v685
    %v843 = vpop.f32.mrf.mxu0
    %v844 = vadd.f32 %v722, %v843
    %v845 = vpop.f32.mrf.mxu0
    %v846 = vadd.f32 %v726, %v845
    %v847 = vpop.f32.mrf.mxu0
    %v848 = vadd.f32 %v722, %v847
    %v849 = vpop.f32.mrf.mxu0
    %v850 = vadd.f32 %v726, %v849
    %851 = vmatprep.mubr.bf16.mxu0 0
    %852 = vmatmul.mubr.bf16.gmra.mxu0 %v686
    %v853 = vpop.f32.mrf.mxu0
    %v854 = vadd.f32 %v722, %v853
    %v855 = vpop.f32.mrf.mxu0
    %v856 = vadd.f32 %v726, %v855
    %v857 = vpop.f32.mrf.mxu0
    %v858 = vadd.f32 %v722, %v857
    %v859 = vpop.f32.mrf.mxu0
    %v860 = vadd.f32 %v726, %v859
    %861 = vmatprep.mubr.bf16.mxu0 0
    %862 = vmatmul.mubr.bf16.gmra.mxu0 %v687
    %v863 = vpop.f32.mrf.mxu0
    %v864 = vadd.f32 %v722, %v863
    %v865 = vpop.f32.mrf.mxu0
    %v866 = vadd.f32 %v726, %v865
    %v867 = vpop.f32.mrf.mxu0
    %v868 = vadd.f32 %v722, %v867
    %v869 = vpop.f32.mrf.mxu0
    %v870 = vadd.f32 %v726, %v869
    %871 = vmatprep.mubr.bf16.mxu0 0
    %872 = vmatmul.mubr.bf16.gmra.mxu0 %v688
    %v873 = vpop.f32.mrf.mxu0
    %v874 = vadd.f32 %v722, %v873
    %v875 = vpop.f32.mrf.mxu0
    %v876 = vadd.f32 %v726, %v875
    %v877 = vpop.f32.mrf.mxu0
    %v878 = vadd.f32 %v722, %v877
    %v879 = vpop.f32.mrf.mxu0
    %v880 = vadd.f32 %v726, %v879
    %881 = vmatprep.mubr.bf16.mxu0 0
    %882 = vmatmul.mubr.bf16.gmra.mxu0 %v689
    %v883 = vpop.f32.mrf.mxu0
    %v884 = vadd.f32 %v722, %v883
    %v885 = vpop.f32.mrf.mxu0
    %v886 = vadd.f32 %v726, %v885
    %v887 = vpop.f32.mrf.mxu0
    %v888 = vadd.f32 %v722, %v887
    %v889 = vpop.f32.mrf.mxu0
    %v890 = vadd.f32 %v726, %v889
    %891 = vmatprep.mubr.bf16.mxu0 0
    %892 = vmatmul.mubr.bf16.gmra.mxu0 %v690
    %v893 = vpop.f32.mrf.mxu0
    %v894 = vadd.f32 %v722, %v893
    %v895 = vpop.f32.mrf.mxu0
    %v896 = vadd.f32 %v726, %v895
    %v897 = vpop.f32.mrf.mxu0
    %v898 = vadd.f32 %v722, %v897
    %v899 = vpop.f32.mrf.mxu0
    %v900 = vadd.f32 %v726, %v899
    %901 = vmatprep.mubr.bf16.mxu0 0
    %902 = vmatmul.mubr.bf16.gmra.mxu0 %v691
    %v903 = vpop.f32.mrf.mxu0
    %v904 = vadd.f32 %v722, %v903
    %v905 = vpop.f32.mrf.mxu0
    %v906 = vadd.f32 %v726, %v905
    %v907 = vpop.f32.mrf.mxu0
    %v908 = vadd.f32 %v722, %v907
    %v909 = vpop.f32.mrf.mxu0
    %v910 = vadd.f32 %v726, %v909
    %911 = vmatprep.mubr.bf16.mxu0 0
    %912 = vmatmul.mubr.bf16.gmra.mxu0 %v692
    %v913 = vpop.f32.mrf.mxu0
    %v914 = vadd.f32 %v722, %v913
    %v915 = vpop.f32.mrf.mxu0
    %v916 = vadd.f32 %v726, %v915
    %v917 = vpop.f32.mrf.mxu0
    %v918 = vadd.f32 %v722, %v917
    %v919 = vpop.f32.mrf.mxu0
    %v920 = vadd.f32 %v726, %v919
    %921 = vmatprep.mubr.bf16.mxu0 0
    %922 = vmatmul.mubr.bf16.gmra.mxu0 %v693
    %v923 = vpop.f32.mrf.mxu0
    %v924 = vadd.f32 %v722, %v923
    %v925 = vpop.f32.mrf.mxu0
    %v926 = vadd.f32 %v726, %v925
    %v927 = vpop.f32.mrf.mxu0
    %v928 = vadd.f32 %v722, %v927
    %v929 = vpop.f32.mrf.mxu0
    %v930 = vadd.f32 %v726, %v929
    %931 = vmatprep.mubr.bf16.mxu0 0
    %932 = vmatmul.mubr.bf16.gmra.mxu0 %v694
    %v933 = vpop.f32.mrf.mxu0
    %v934 = vadd.f32 %v722, %v933
    %v935 = vpop.f32.mrf.mxu0
    %v936 = vadd.f32 %v726, %v935
    %v937 = vpop.f32.mrf.mxu0
    %v938 = vadd.f32 %v722, %v937
    %v939 = vpop.f32.mrf.mxu0
    %v940 = vadd.f32 %v726, %v939
    %941 = vmatprep.mubr.bf16.mxu0 0
    %942 = vmatmul.mubr.bf16.gmra.mxu0 %v695
    %v943 = vpop.f32.mrf.mxu0
    %v944 = vadd.f32 %v722, %v943
    %v945 = vpop.f32.mrf.mxu0
    %v946 = vadd.f32 %v726, %v945
    %v947 = vpop.f32.mrf.mxu0
    %v948 = vadd.f32 %v722, %v947
    %v949 = vpop.f32.mrf.mxu0
    %v950 = vadd.f32 %v726, %v949
    %951 = vmatprep.mubr.bf16.mxu0 0
    %952 = vmatmul.mubr.bf16.gmra.mxu0 %v696
    %v953 = vpop.f32.mrf.mxu0
    %v954 = vadd.f32 %v722, %v953
    %v955 = vpop.f32.mrf.mxu0
    %v956 = vadd.f32 %v726, %v955
    %v957 = vpop.f32.mrf.mxu0
    %v958 = vadd.f32 %v722, %v957
    %v959 = vpop.f32.mrf.mxu0
    %v960 = vadd.f32 %v726, %v959
    %961 = vmatprep.mubr.bf16.mxu0 0
    %962 = vmatmul.mubr.bf16.gmra.mxu0 %v697
    %v963 = vpop.f32.mrf.mxu0
    %v964 = vadd.f32 %v722, %v963
    %v965 = vpop.f32.mrf.mxu0
    %v966 = vadd.f32 %v726, %v965
    %v967 = vpop.f32.mrf.mxu0
    %v968 = vadd.f32 %v722, %v967
    %v969 = vpop.f32.mrf.mxu0
    %v970 = vadd.f32 %v726, %v969
    %971 = vmatprep.mubr.bf16.mxu0 0
    %972 = vmatmul.mubr.bf16.gmra.mxu0 %v698
    %v973 = vpop.f32.mrf.mxu0
    %v974 = vadd.f32 %v722, %v973
    %v975 = vpop.f32.mrf.mxu0
    %v976 = vadd.f32 %v726, %v975
    %v977 = vpop.f32.mrf.mxu0
    %v978 = vadd.f32 %v722, %v977
    %v979 = vpop.f32.mrf.mxu0
    %v980 = vadd.f32 %v726, %v979
    %981 = vmatprep.mubr.bf16.mxu0 0
    %982 = vmatmul.mubr.bf16.gmra.mxu0 %v699
    %v983 = vpop.f32.mrf.mxu0
    %v984 = vadd.f32 %v722, %v983
    %v985 = vpop.f32.mrf.mxu0
    %v986 = vadd.f32 %v726, %v985
    %v987 = vpop.f32.mrf.mxu0
    %v988 = vadd.f32 %v722, %v987
    %v989 = vpop.f32.mrf.mxu0
    %v990 = vadd.f32 %v726, %v989
    %991 = vmatprep.mubr.bf16.mxu0 0
    %992 = vmatmul.mubr.bf16.gmra.mxu0 %v700
    %v993 = vpop.f32.mrf.mxu0
    %v994 = vadd.f32 %v722, %v993
    %v995 = vpop.f32.mrf.mxu0
    %v996 = vadd.f32 %v726, %v995
    %v997 = vpop.f32.mrf.mxu0
    %v998 = vadd.f32 %v722, %v997
    %v999 = vpop.f32.mrf.mxu0
    %v1000 = vadd.f32 %v726, %v999
    %1001 = vdwg.mxu0
    %v1002 = vtanh.pop %v844
    %v1003 = vtanh.pop %v846
    %v1004 = vtanh.pop %v848
    %v1005 = vtanh.pop %v850
    %v1006 = vtanh.pop %v854
    %v1007 = vtanh.pop %v856
    %v1008 = vtanh.pop %v858
    %v1009 = vtanh.pop %v860
    %v1010 = vtanh.pop %v864
    %v1011 = vtanh.pop %v866
    %v1012 = vtanh.pop %v868
    %v1013 = vtanh.pop %v870
    %v1014 = vtanh.pop %v874
    %v1015 = vtanh.pop %v876
    %v1016 = vtanh.pop %v878
    %v1017 = vtanh.pop %v880
    %v1018 = vtanh.pop %v884
    %v1019 = vtanh.pop %v886
    %v1020 = vtanh.pop %v888
    %v1021 = vtanh.pop %v890
    %v1022 = vtanh.pop %v894
    %v1023 = vtanh.pop %v896
    %v1024 = vtanh.pop %v898
    %v1025 = vtanh.pop %v900
    %v1026 = vtanh.pop %v904
    %v1027 = vtanh.pop %v906
    %v1028 = vtanh.pop %v908
    %v1029 = vtanh.pop %v910
    %v1030 = vtanh.pop %v914
    %v1031 = vtanh.pop %v916
    %v1032 = vtanh.pop %v918
    %v1033 = vtanh.pop %v920
    %v1034 = vtanh.pop %v924
    %v1035 = vtanh.pop %v926
    %v1036 = vtanh.pop %v928
    %v1037 = vtanh.pop %v930
    %v1038 = vtanh.pop %v934
    %v1039 = vtanh.pop %v936
    %v1040 = vtanh.pop %v938
    %v1041 = vtanh.pop %v940
    %v1042 = vtanh.pop %v944
    %v1043 = vtanh.pop %v946
    %v1044 = vtanh.pop %v948
    %v1045 = vtanh.pop %v950
    %v1046 = vtanh.pop %v954
    %v1047 = vtanh.pop %v956
    %v1048 = vtanh.pop %v958
    %v1049 = vtanh.pop %v960
    %v1050 = vtanh.pop %v964
    %v1051 = vtanh.pop %v966
    %v1052 = vtanh.pop %v968
    %v1053 = vtanh.pop %v970
    %v1054 = vtanh.pop %v974
    %v1055 = vtanh.pop %v976
    %v1056 = vtanh.pop %v978
    %v1057 = vtanh.pop %v980
    %v1058 = vtanh.pop %v984
    %v1059 = vtanh.pop %v986
    %v1060 = vtanh.pop %v988
    %v1061 = vtanh.pop %v990
    %v1062 = vtanh.pop %v994
    %v1063 = vtanh.pop %v996
    %v1064 = vtanh.pop %v998
    %v1065 = vtanh.pop %v1000
    %1066 = vst [vmem:[#allocation2] sm:$0xff] %v1002
    %1067 = vst [vmem:[#allocation2 + $0x8] sm:$0xff] %v1003
    %1068 = vst [vmem:[#allocation2 + $0x10] sm:$0xff] %v1004
    %1069 = vst [vmem:[#allocation2 + $0x18] sm:$0xff] %v1005
    %1070 = vst [vmem:[#allocation2 + $0x20] sm:$0xff] %v1006
    %1071 = vst [vmem:[#allocation2 + $0x28] sm:$0xff] %v1007
    %1072 = vst [vmem:[#allocation2 + $0x30] sm:$0xff] %v1008
    %1073 = vst [vmem:[#allocation2 + $0x38] sm:$0xff] %v1009
    %1074 = vst [vmem:[#allocation2 + $0x40] sm:$0xff] %v1010
    %1075 = vst [vmem:[#allocation2 + $0x48] sm:$0xff] %v1011
    %1076 = vst [vmem:[#allocation2 + $0x50] sm:$0xff] %v1012
    %1077 = vst [vmem:[#allocation2 + $0x58] sm:$0xff] %v1013
    %1078 = vst [vmem:[#allocation2 + $0x60] sm:$0xff] %v1014
    %1079 = vst [vmem:[#allocation2 + $0x68] sm:$0xff] %v1015
    %1080 = vst [vmem:[#allocation2 + $0x70] sm:$0xff] %v1016
    %1081 = vst [vmem:[#allocation2 + $0x78] sm:$0xff] %v1017
    %1082 = vst [vmem:[#allocation2 + $0x80] sm:$0xff] %v1018
    %1083 = vst [vmem:[#allocation2 + $0x88] sm:$0xff] %v1019
    %1084 = vst [vmem:[#allocation2 + $0x90] sm:$0xff] %v1020
    %1085 = vst [vmem:[#allocation2 + $0x98] sm:$0xff] %v1021
    %1086 = vst [vmem:[#allocation2 + $0xa0] sm:$0xff] %v1022
    %1087 = vst [vmem:[#allocation2 + $0xa8] sm:$0xff] %v1023
    %1088 = vst [vmem:[#allocation2 + $0xb0] sm:$0xff] %v1024
    %1089 = vst [vmem:[#allocation2 + $0xb8] sm:$0xff] %v1025
    %1090 = vst [vmem:[#allocation2 + $0xc0] sm:$0xff] %v1026
    %1091 = vst [vmem:[#allocation2 + $0xc8] sm:$0xff] %v1027
    %1092 = vst [vmem:[#allocation2 + $0xd0] sm:$0xff] %v1028
    %1093 = vst [vmem:[#allocation2 + $0xd8] sm:$0xff] %v1029
    %1094 = vst [vmem:[#allocation2 + $0xe0] sm:$0xff] %v1030
    %1095 = vst [vmem:[#allocation2 + $0xe8] sm:$0xff] %v1031
    %1096 = vst [vmem:[#allocation2 + $0xf0] sm:$0xff] %v1032
    %1097 = vst [vmem:[#allocation2 + $0xf8] sm:$0xff] %v1033
    %1098 = vst [vmem:[#allocation2 + $0x100] sm:$0xff] %v1034
    %1099 = vst [vmem:[#allocation2 + $0x108] sm:$0xff] %v1035
    %1100 = vst [vmem:[#allocation2 + $0x110] sm:$0xff] %v1036
    %1101 = vst [vmem:[#allocation2 + $0x118] sm:$0xff] %v1037
    %1102 = vst [vmem:[#allocation2 + $0x120] sm:$0xff] %v1038
    %1103 = vst [vmem:[#allocation2 + $0x128] sm:$0xff] %v1039
    %1104 = vst [vmem:[#allocation2 + $0x130] sm:$0xff] %v1040
    %1105 = vst [vmem:[#allocation2 + $0x138] sm:$0xff] %v1041
    %1106 = vst [vmem:[#allocation2 + $0x140] sm:$0xff] %v1042
    %1107 = vst [vmem:[#allocation2 + $0x148] sm:$0xff] %v1043
    %1108 = vst [vmem:[#allocation2 + $0x150] sm:$0xff] %v1044
    %1109 = vst [vmem:[#allocation2 + $0x158] sm:$0xff] %v1045
    %1110 = vst [vmem:[#allocation2 + $0x160] sm:$0xff] %v1046
    %1111 = vst [vmem:[#allocation2 + $0x168] sm:$0xff] %v1047
    %1112 = vst [vmem:[#allocation2 + $0x170] sm:$0xff] %v1048
    %1113 = vst [vmem:[#allocation2 + $0x178] sm:$0xff] %v1049
    %1114 = vst [vmem:[#allocation2 + $0x180] sm:$0xff] %v1050
    %1115 = vst [vmem:[#allocation2 + $0x188] sm:$0xff] %v1051
    %1116 = vst [vmem:[#allocation2 + $0x190] sm:$0xff] %v1052
    %1117 = vst [vmem:[#allocation2 + $0x198] sm:$0xff] %v1053
    %1118 = vst [vmem:[#allocation2 + $0x1a0] sm:$0xff] %v1054
    %1119 = vst [vmem:[#allocation2 + $0x1a8] sm:$0xff] %v1055
    %1120 = vst [vmem:[#allocation2 + $0x1b0] sm:$0xff] %v1056
    %1121 = vst [vmem:[#allocation2 + $0x1b8] sm:$0xff] %v1057
    %1122 = vst [vmem:[#allocation2 + $0x1c0] sm:$0xff] %v1058
    %1123 = vst [vmem:[#allocation2 + $0x1c8] sm:$0xff] %v1059
    %1124 = vst [vmem:[#allocation2 + $0x1d0] sm:$0xff] %v1060
    %1125 = vst [vmem:[#allocation2 + $0x1d8] sm:$0xff] %v1061
    %1126 = vst [vmem:[#allocation2 + $0x1e0] sm:$0xff] %v1062
    %1127 = vst [vmem:[#allocation2 + $0x1e8] sm:$0xff] %v1063
    %1128 = vst [vmem:[#allocation2 + $0x1f0] sm:$0xff] %v1064
    %1129 = vst [vmem:[#allocation2 + $0x1f8] sm:$0xff] %v1065
    // Predicated region
    $region30: #{tpu_custom_call.1} parent=1 // pred_check
      _
    $region31: #{tpu_custom_call.1} parent=1 // pred_check_branch
      %1131 = sbr.rel (0) target = $region33
    $region32: #{tpu_custom_call.1} parent=1 // pred_region
      %s1133 = ssub.s32 8192, 8192
      %1134 = vsyncadd [#allocation3], %s1133
      %s1135 = sshll.u32 [#allocation2], 4
      %s1136 = int_to_ptr.vmem [resolvable:$true] %s1135
      %1141 = dma.vmem_to_hbm [thread:$0]  %s1136, 8192, %s7, [#allocation3], 256, 256, 16
    $region33: #{tpu_custom_call.1} parent=1 // pred_fallthru
      _
    // Predicated region
    $region34: #{tpu_custom_call.1} parent=1 // pred_check
      _
    $region35: #{tpu_custom_call.1} parent=1 // pred_check_branch
      %1143 = sbr.rel (0) target = $region37
    $region36: #{tpu_custom_call.1} parent=1 // pred_region
      %1144 = dma.done [#allocation3], 8192
    $region37: #{tpu_custom_call.1} parent=1 // pred_fallthru
      _
    %1145 = vsyncpa [#allocation3], 1

</llo_original>
